<compile_context>
chip_gen: v6e
topology: v6e:2x2x1
jax: 0.10.0
libtpu: 0.0.40
codegen_flags: <defaults>
</compile_context>

<pallas_src>
import functools

import jax
import jax.numpy as jnp
from jax.experimental import pallas as pl
from jax.experimental.pallas import tpu as pltpu


def _supcon_kernel(la_ref, lc_ref, a_ref, ct_ref, out_ref,
                   m_scr, e_scr, ps_scr, cnt_scr,
                   *, inv_temp, m_total):
    """One (TN, TM) tile of the SupCon forward with online softmax.

    Running per-row stats in VMEM scratch (shape (TN, 1), f32):
      m_scr   running row max of scaled logits
      e_scr   running sum_j (1-mask) * exp(s - m)   (rescaled when max updates)
      ps_scr  running sum_j mask * s                (independent of max / denom)
      cnt_scr running sum_j mask
    """
    j = pl.program_id(1)

    @pl.when(j == 0)
    def _init():
        m_scr[...] = jnp.full_like(m_scr, -jnp.inf)
        e_scr[...] = jnp.zeros_like(e_scr)
        ps_scr[...] = jnp.zeros_like(ps_scr)
        cnt_scr[...] = jnp.zeros_like(cnt_scr)

    # Fold 1/temperature into the small (TN, D) anchor tile; feed the MXU in
    # the input dtype, accumulate in f32.
    a_scaled = a_ref[...] * inv_temp                          # (TN, D)
    s = jnp.dot(a_scaled, ct_ref[...],                        # (TN, TM) f32
                preferred_element_type=jnp.float32)

    # Positive mask as booleans; never materialize float mask / (1 - mask).
    same = la_ref[...] == lc_ref[...]                         # (TN, TM) bool

    # Online row-max and rescaled negative-exp accumulation.
    m_prev = m_scr[...]                                       # (TN, 1)
    m_new = jnp.maximum(m_prev, jnp.max(s, axis=1, keepdims=True))
    alpha = jnp.exp(m_prev - m_new)                           # exp(-inf)=0 on 1st tile
    p = jnp.exp(s - m_new)                                    # EUP
    e_scr[...] = alpha * e_scr[...] + jnp.sum(
        jnp.where(same, 0.0, p), axis=1, keepdims=True)

    # Positive-pair accumulation on the raw scaled logits (row max and the
    # log-denominator are applied once in the epilogue).
    ps_scr[...] += jnp.sum(jnp.where(same, s, 0.0), axis=1, keepdims=True)
    cnt_scr[...] += jnp.sum(same.astype(jnp.float32), axis=1, keepdims=True)
    m_scr[...] = m_new

    @pl.when(j == pl.num_programs(1) - 1)
    def _finalize():
        cnt = cnt_scr[...]                                    # (TN, 1)
        # sum_j (1-mask) * (exp(s - m) + 1e-5)  ==  e + 1e-5 * (M - cnt)
        denom = e_scr[...] + 1e-5 * (m_total - cnt)
        # sum_j mask*(s - m - log denom) / cnt  ==  ps/cnt - m - log(denom)
        # TODO(synk): cnt == 0 (anchor with no positive) yields NaN, exactly
        # matching the reference PyTorch forward; guard with jnp.where if a
        # finite fallback is preferred.
        out_ref[...] = ps_scr[...] / cnt - m_scr[...] - jnp.log(denom)


def _pick_tile(dim, candidates):
    for c in candidates:
        if dim % c == 0:
            return c
    return dim  # full-extent block is always a legal BlockSpec


def supcon_loss(labels_anchor, anchor_feature, contrast_feature,
                labels_contrast, temperature=0.1):
    """Pallas-TPU SupConLoss forward.

    labels_anchor:    (N,)   int
    anchor_feature:   (N, D) float
    contrast_feature: (M, D) float
    labels_contrast:  (M,)   int
    returns scalar float32 loss
    """
    N, D = anchor_feature.shape
    M, Dc = contrast_feature.shape
    assert Dc == D

    # Per-step overhead amortization: prefer the largest tile that divides the
    # dim.  At these sizes the (TN, D) + (D, TM) double-buffered inputs plus a
    # handful of (TN, TM) f32 temporaries stay comfortably inside the 32 MiB
    # scoped VMEM limit (worst case tn=512, tm=1024, D=1024: ~12 MiB).
    tn = _pick_tile(N, (512, 256, 128, 64, 32, 16, 8))
    tm = _pick_tile(M, (1024, 512, 256, 128))

    la = labels_anchor.reshape(N, 1).astype(jnp.int32)        # (N, 1)
    lc = labels_contrast.reshape(1, M).astype(jnp.int32)      # (1, M)
    # Pre-transpose so the MXU RHS is contraction-major (D on sublanes, M on
    # lanes): no per-tile transpose inside the kernel.
    ct = contrast_feature.T                                   # (D, M)

    kernel = functools.partial(_supcon_kernel,
                               inv_temp=float(1.0 / temperature),
                               m_total=float(M))

    itemsize = anchor_feature.dtype.itemsize
    cost = pl.CostEstimate(
        flops=2 * N * M * D,
        transcendentals=N * M + N,
        bytes_accessed=(N * D + M * D) * itemsize + (2 * N + M) * 4)

    grid_spec = pltpu.PrefetchScalarGridSpec(
        num_scalar_prefetch=0,
        grid=(N // tn, M // tm),
        in_specs=[
            pl.BlockSpec((tn, 1), lambda i, j: (i, 0)),       # labels_anchor
            pl.BlockSpec((1, tm), lambda i, j: (0, j)),       # labels_contrast
            pl.BlockSpec((tn, D), lambda i, j: (i, 0)),       # anchor tile (resident per i)
            pl.BlockSpec((D, tm), lambda i, j: (0, j)),       # contrast^T tile
        ],
        out_specs=pl.BlockSpec((tn, 1), lambda i, j: (i, 0)),
        scratch_shapes=[pltpu.VMEM((tn, 1), jnp.float32)] * 4,
    )

    mean_log_prob_pos = pl.pallas_call(
        kernel,
        out_shape=jax.ShapeDtypeStruct((N, 1), jnp.float32),
        grid_spec=grid_spec,
        compiler_params=pltpu.CompilerParams(
            dimension_semantics=("parallel", "arbitrary"),
            vmem_limit_bytes=32 * 1024 * 1024),
        cost_estimate=cost,
    )(la, lc, anchor_feature, ct)

    return -jnp.mean(mean_log_prob_pos)


def _reference(labels_anchor, anchor_feature, contrast_feature, labels_contrast,
               temperature=0.1):
    """Pure-JAX reference mirroring the PyTorch forward."""
    adc = (anchor_feature.astype(jnp.float32)
           @ contrast_feature.astype(jnp.float32).T) / temperature
    logits = adc - jnp.max(adc, axis=1, keepdims=True)
    mask = (labels_anchor[:, None] == labels_contrast[None, :]).astype(jnp.float32)
    exp_logits = (jnp.exp(logits) + 1e-5) * (1.0 - mask)
    log_prob = logits - jnp.log(jnp.sum(exp_logits, axis=1, keepdims=True))
    mean_log_prob_pos = jnp.sum(mask * log_prob, axis=1) / jnp.sum(mask, axis=1)
    return -jnp.mean(mean_log_prob_pos)


if __name__ == "__main__":
    key = jax.random.PRNGKey(0)
    k_a, k_c = jax.random.split(key)

    # Small but multi-tile shapes: (128, 128) tiles -> grid = (3, 5), exercising
    # both the online-softmax M loop and multiple parallel N tiles.
    N, M, D = 384, 640, 64
    anchor_feature = jax.random.normal(k_a, (N, D), dtype=jnp.float32)
    contrast_feature = jax.random.normal(k_c, (M, D), dtype=jnp.float32)
    # L2-normalize rows (standard for SupCon) -> well-scaled logits.
    anchor_feature = anchor_feature / jnp.linalg.norm(
        anchor_feature, axis=1, keepdims=True)
    contrast_feature = contrast_feature / jnp.linalg.norm(
        contrast_feature, axis=1, keepdims=True)
    # Deterministic labels with guaranteed positives for every anchor row.
    labels_anchor = (jnp.arange(N) % 8).astype(jnp.int32)
    labels_contrast = (jnp.arange(M) % 8).astype(jnp.int32)

    loss = supcon_loss(labels_anchor, anchor_feature, contrast_feature,
                       labels_contrast, temperature=0.1)
    loss = jax.block_until_ready(loss)

    ref = _reference(labels_anchor, anchor_feature, contrast_feature,
                     labels_contrast, temperature=0.1)
    assert bool(jnp.isfinite(loss)), loss
    assert jnp.allclose(loss, ref, rtol=1e-4, atol=1e-4), (loss, ref)

    print("KERNEL_OK")
</pallas_src>

<mosaic_0001>
module attributes {stable_mosaic.version = 11 : i64} {
  func.func @_supcon_kernel(%arg0: i32, %arg1: i32, %arg2: memref<128x1xi32, #tpu.memory_space<vmem>>, %arg3: memref<1x128xi32, #tpu.memory_space<vmem>>, %arg4: memref<128x64xf32, #tpu.memory_space<vmem>>, %arg5: memref<64x128xf32, #tpu.memory_space<vmem>>, %arg6: memref<128x1xf32, #tpu.memory_space<vmem>>, %arg7: memref<128x1xf32, #tpu.memory_space<vmem>>, %arg8: memref<128x1xf32, #tpu.memory_space<vmem>>, %arg9: memref<128x1xf32, #tpu.memory_space<vmem>>, %arg10: memref<128x1xf32, #tpu.memory_space<vmem>>) attributes {dimension_semantics = [#tpu.dimension_semantics<parallel>, #tpu.dimension_semantics<arbitrary>], iteration_bounds = array<i64: 3, 5>, scalar_prefetch = 0 : i64, scratch_operands = 4 : i64, tpu.core_type = #tpu.core_type<tc>, window_params = [{transform_indices = @transform_0, window_bounds = array<i64: 128, 1>}, {transform_indices = @transform_1, window_bounds = array<i64: 1, 128>}, {transform_indices = @transform_2, window_bounds = array<i64: 128, 64>}, {transform_indices = @transform_3, window_bounds = array<i64: 64, 128>}, {transform_indices = @transform_4, window_bounds = array<i64: 128, 1>}]} {
    %c0_i32 = arith.constant 0 : i32
    %0 = arith.cmpi eq, %arg1, %c0_i32 : i32
    %1 = arith.extui %0 : i1 to i32
    %c0_i32_0 = arith.constant 0 : i32
    %2 = arith.cmpi ne, %1, %c0_i32_0 : i32
    scf.if %2 {
      %cst_32 = arith.constant 0xFF800000 : f32
      %48 = vector.broadcast %cst_32 : f32 to vector<128x1xf32>
      %c0_33 = arith.constant 0 : index
      %c0_34 = arith.constant 0 : index
      %49 = vector.load %arg7[%c0_33, %c0_34] : memref<128x1xf32, #tpu.memory_space<vmem>>, vector<128x1xf32>
      tpu.vector_store %arg7[%c0_33, %c0_34], %48 {strides = array<i32>} : memref<128x1xf32, #tpu.memory_space<vmem>>, vector<128x1xf32>,
      %cst_35 = arith.constant 0.000000e+00 : f32
      %50 = vector.broadcast %cst_35 : f32 to vector<128x1xf32>
      %c0_36 = arith.constant 0 : index
      %c0_37 = arith.constant 0 : index
      %51 = vector.load %arg8[%c0_36, %c0_37] : memref<128x1xf32, #tpu.memory_space<vmem>>, vector<128x1xf32>
      tpu.vector_store %arg8[%c0_36, %c0_37], %50 {strides = array<i32>} : memref<128x1xf32, #tpu.memory_space<vmem>>, vector<128x1xf32>,
      %cst_38 = arith.constant 0.000000e+00 : f32
      %52 = vector.broadcast %cst_38 : f32 to vector<128x1xf32>
      %c0_39 = arith.constant 0 : index
      %c0_40 = arith.constant 0 : index
      %53 = vector.load %arg9[%c0_39, %c0_40] : memref<128x1xf32, #tpu.memory_space<vmem>>, vector<128x1xf32>
      tpu.vector_store %arg9[%c0_39, %c0_40], %52 {strides = array<i32>} : memref<128x1xf32, #tpu.memory_space<vmem>>, vector<128x1xf32>,
      %cst_41 = arith.constant 0.000000e+00 : f32
      %54 = vector.broadcast %cst_41 : f32 to vector<128x1xf32>
      %c0_42 = arith.constant 0 : index
      %c0_43 = arith.constant 0 : index
      %55 = vector.load %arg10[%c0_42, %c0_43] : memref<128x1xf32, #tpu.memory_space<vmem>>, vector<128x1xf32>
      tpu.vector_store %arg10[%c0_42, %c0_43], %54 {strides = array<i32>} : memref<128x1xf32, #tpu.memory_space<vmem>>, vector<128x1xf32>,
    } else {
    }
    %c0 = arith.constant 0 : index
    %c0_1 = arith.constant 0 : index
    %3 = vector.load %arg4[%c0, %c0_1] : memref<128x64xf32, #tpu.memory_space<vmem>>, vector<128x64xf32>
    %cst = arith.constant 1.000000e+01 : f32
    %4 = vector.broadcast %cst : f32 to vector<128x64xf32>
    %5 = arith.mulf %3, %4 : vector<128x64xf32>
    %c0_2 = arith.constant 0 : index
    %c0_3 = arith.constant 0 : index
    %6 = vector.load %arg5[%c0_2, %c0_3] : memref<64x128xf32, #tpu.memory_space<vmem>>, vector<64x128xf32>
    %cst_4 = arith.constant dense<0.000000e+00> : vector<128x128xf32>
    %7 = tpu.matmul %5, %6, %cst_4 {dimension_numbers = #tpu.dot_dimension_numbers<[1], [0], [0], [1], [0, 0, 1, 1], [], []>} : vector<128x64xf32>, vector<64x128xf32>, vector<128x128xf32> -> vector<128x128xf32>
    %c0_5 = arith.constant 0 : index
    %c0_6 = arith.constant 0 : index
    %8 = vector.load %arg2[%c0_5, %c0_6] : memref<128x1xi32, #tpu.memory_space<vmem>>, vector<128x1xi32>
    %c0_7 = arith.constant 0 : index
    %c0_8 = arith.constant 0 : index
    %9 = vector.load %arg3[%c0_7, %c0_8] : memref<1x128xi32, #tpu.memory_space<vmem>>, vector<1x128xi32>
    %10 = vector.broadcast %8 : vector<128x1xi32> to vector<128x128xi32>
    %11 = vector.broadcast %9 : vector<1x128xi32> to vector<128x128xi32>
    %12 = arith.cmpi eq, %10, %11 : vector<128x128xi32>
    %c0_9 = arith.constant 0 : index
    %c0_10 = arith.constant 0 : index
    %13 = vector.load %arg7[%c0_9, %c0_10] : memref<128x1xf32, #tpu.memory_space<vmem>>, vector<128x1xf32>
    %cst_11 = arith.constant dense<0xFF800000> : vector<128xf32>
    %14 = vector.multi_reduction <maximumf>, %7, %cst_11 [1] : vector<128x128xf32> to vector<128xf32>
    %15 = vector.shape_cast %14 : vector<128xf32> to vector<128x1xf32>
    %16 = arith.maximumf %13, %15 : vector<128x1xf32>
    %17 = arith.subf %13, %16 : vector<128x1xf32>
    %18 = math.exp %17 : vector<128x1xf32>
    %19 = vector.broadcast %16 : vector<128x1xf32> to vector<128x128xf32>
    %20 = arith.subf %7, %19 : vector<128x128xf32>
    %21 = math.exp %20 : vector<128x128xf32>
    %c0_12 = arith.constant 0 : index
    %c0_13 = arith.constant 0 : index
    %22 = vector.load %arg8[%c0_12, %c0_13] : memref<128x1xf32, #tpu.memory_space<vmem>>, vector<128x1xf32>
    %23 = arith.mulf %18, %22 : vector<128x1xf32>
    %cst_14 = arith.constant 0.000000e+00 : f32
    %24 = vector.broadcast %cst_14 : f32 to vector<128x128xf32>
    %25 = arith.select %12, %24, %21 : vector<128x128xi1>, vector<128x128xf32>
    %cst_15 = arith.constant dense<0.000000e+00> : vector<128xf32>
    %26 = vector.multi_reduction <add>, %25, %cst_15 [1] : vector<128x128xf32> to vector<128xf32>
    %27 = vector.shape_cast %26 : vector<128xf32> to vector<128x1xf32>
    %28 = arith.addf %23, %27 : vector<128x1xf32>
    %c0_16 = arith.constant 0 : index
    %c0_17 = arith.constant 0 : index
    %29 = vector.load %arg8[%c0_16, %c0_17] : memref<128x1xf32, #tpu.memory_space<vmem>>, vector<128x1xf32>
    tpu.vector_store %arg8[%c0_16, %c0_17], %28 {strides = array<i32>} : memref<128x1xf32, #tpu.memory_space<vmem>>, vector<128x1xf32>,
    %c0_18 = arith.constant 0 : index
    %c0_19 = arith.constant 0 : index
    %30 = vector.load %arg9[%c0_18, %c0_19] : memref<128x1xf32, #tpu.memory_space<vmem>>, vector<128x1xf32>
    %cst_20 = arith.constant 0.000000e+00 : f32
    %31 = vector.broadcast %cst_20 : f32 to vector<128x128xf32>
    %32 = arith.select %12, %7, %31 : vector<128x128xi1>, vector<128x128xf32>
    %cst_21 = arith.constant dense<0.000000e+00> : vector<128xf32>
    %33 = vector.multi_reduction <add>, %32, %cst_21 [1] : vector<128x128xf32> to vector<128xf32>
    %34 = vector.shape_cast %33 : vector<128xf32> to vector<128x1xf32>
    %35 = arith.addf %30, %34 : vector<128x1xf32>
    %c0_22 = arith.constant 0 : index
    %c0_23 = arith.constant 0 : index
    %36 = vector.load %arg9[%c0_22, %c0_23] : memref<128x1xf32, #tpu.memory_space<vmem>>, vector<128x1xf32>
    tpu.vector_store %arg9[%c0_22, %c0_23], %35 {strides = array<i32>} : memref<128x1xf32, #tpu.memory_space<vmem>>, vector<128x1xf32>,
    %c0_24 = arith.constant 0 : index
    %c0_25 = arith.constant 0 : index
    %37 = vector.load %arg10[%c0_24, %c0_25] : memref<128x1xf32, #tpu.memory_space<vmem>>, vector<128x1xf32>
    %38 = arith.extui %12 : vector<128x128xi1> to vector<128x128xi32>
    %39 = arith.sitofp %38 : vector<128x128xi32> to vector<128x128xf32>
    %cst_26 = arith.constant dense<0.000000e+00> : vector<128xf32>
    %40 = vector.multi_reduction <add>, %39, %cst_26 [1] : vector<128x128xf32> to vector<128xf32>
    %41 = vector.shape_cast %40 : vector<128xf32> to vector<128x1xf32>
    %42 = arith.addf %37, %41 : vector<128x1xf32>
    %c0_27 = arith.constant 0 : index
    %c0_28 = arith.constant 0 : index
    %43 = vector.load %arg10[%c0_27, %c0_28] : memref<128x1xf32, #tpu.memory_space<vmem>>, vector<128x1xf32>
    tpu.vector_store %arg10[%c0_27, %c0_28], %42 {strides = array<i32>} : memref<128x1xf32, #tpu.memory_space<vmem>>, vector<128x1xf32>,
    %c0_29 = arith.constant 0 : index
    %c0_30 = arith.constant 0 : index
    %44 = vector.load %arg7[%c0_29, %c0_30] : memref<128x1xf32, #tpu.memory_space<vmem>>, vector<128x1xf32>
    tpu.vector_store %arg7[%c0_29, %c0_30], %16 {strides = array<i32>} : memref<128x1xf32, #tpu.memory_space<vmem>>, vector<128x1xf32>,
    %c4_i32 = arith.constant 4 : i32
    %45 = arith.cmpi eq, %arg1, %c4_i32 : i32
    %46 = arith.extui %45 : i1 to i32
    %c0_i32_31 = arith.constant 0 : i32
    %47 = arith.cmpi ne, %46, %c0_i32_31 : i32
    scf.if %47 {
      %c0_32 = arith.constant 0 : index
      %c0_33 = arith.constant 0 : index
      %48 = vector.load %arg10[%c0_32, %c0_33] : memref<128x1xf32, #tpu.memory_space<vmem>>, vector<128x1xf32>
      %c0_34 = arith.constant 0 : index
      %c0_35 = arith.constant 0 : index
      %49 = vector.load %arg8[%c0_34, %c0_35] : memref<128x1xf32, #tpu.memory_space<vmem>>, vector<128x1xf32>
      %cst_36 = arith.constant 6.400000e+02 : f32
      %50 = vector.broadcast %cst_36 : f32 to vector<128x1xf32>
      %51 = arith.subf %50, %48 : vector<128x1xf32>
      %cst_37 = arith.constant 9.99999974E-6 : f32
      %52 = vector.broadcast %cst_37 : f32 to vector<128x1xf32>
      %53 = arith.mulf %52, %51 : vector<128x1xf32>
      %54 = arith.addf %49, %53 : vector<128x1xf32>
      %c0_38 = arith.constant 0 : index
      %c0_39 = arith.constant 0 : index
      %55 = vector.load %arg9[%c0_38, %c0_39] : memref<128x1xf32, #tpu.memory_space<vmem>>, vector<128x1xf32>
      %56 = arith.divf %55, %48 : vector<128x1xf32>
      %c0_40 = arith.constant 0 : index
      %c0_41 = arith.constant 0 : index
      %57 = vector.load %arg7[%c0_40, %c0_41] : memref<128x1xf32, #tpu.memory_space<vmem>>, vector<128x1xf32>
      %58 = arith.subf %56, %57 : vector<128x1xf32>
      %59 = math.log %54 : vector<128x1xf32>
      %60 = arith.subf %58, %59 : vector<128x1xf32>
      %c0_42 = arith.constant 0 : index
      %c0_43 = arith.constant 0 : index
      %61 = vector.load %arg6[%c0_42, %c0_43] : memref<128x1xf32, #tpu.memory_space<vmem>>, vector<128x1xf32>
      tpu.vector_store %arg6[%c0_42, %c0_43], %60 {strides = array<i32>} : memref<128x1xf32, #tpu.memory_space<vmem>>, vector<128x1xf32>,
    } else {
    }
    return
  }
  func.func @transform_0(%arg0: i32, %arg1: i32) -> (i32, i32) {
    %c0_i32 = arith.constant 0 : i32
    %c0_i32_0 = arith.constant 0 : i32
    return %arg0, %c0_i32 : i32, i32
  }
  func.func @transform_1(%arg0: i32, %arg1: i32) -> (i32, i32) {
    %c0_i32 = arith.constant 0 : i32
    %c0_i32_0 = arith.constant 0 : i32
    return %c0_i32, %arg1 : i32, i32
  }
  func.func @transform_2(%arg0: i32, %arg1: i32) -> (i32, i32) {
    %c0_i32 = arith.constant 0 : i32
    %c0_i32_0 = arith.constant 0 : i32
    return %arg0, %c0_i32 : i32, i32
  }
  func.func @transform_3(%arg0: i32, %arg1: i32) -> (i32, i32) {
    %c0_i32 = arith.constant 0 : i32
    %c0_i32_0 = arith.constant 0 : i32
    return %c0_i32, %arg1 : i32, i32
  }
  func.func @transform_4(%arg0: i32, %arg1: i32) -> (i32, i32) {
    %c0_i32 = arith.constant 0 : i32
    %c0_i32_0 = arith.constant 0 : i32
    return %arg0, %c0_i32 : i32, i32
  }
}

</mosaic_0001>

<llo_original>
// kernel: tpu_custom_call.1
$region0: #{tpu_custom_call.1}
  #allocation0 [shape = 'u32[]', space=smem, size = 0x4, offset = 0x4, fixed_abs, tag = 'smem constant byte address 0x4 - core index']
  #allocation1 [shape = 'u32[144,128]{1,0:T(1,128)}', space=vmem, size = 0x12000, scoped, tag = 'internal scratch']
  #allocation2 [shape = 'f32[128,1]{1,0:T(8,128)}', space=vmem, size = 0x10000, scoped, tag = 'scratch operand']
  #allocation3 [shape = 'f32[128,1]{1,0:T(8,128)}', space=vmem, size = 0x10000, scoped, tag = 'scratch operand']
  #allocation4 [shape = 'f32[128,1]{1,0:T(8,128)}', space=vmem, size = 0x10000, scoped, tag = 'scratch operand']
  #allocation5 [shape = 'f32[128,1]{1,0:T(8,128)}', space=vmem, size = 0x10000, scoped, tag = 'scratch operand']
  %s0 = inlined_call_operand.vmem [shape: s32[384,1], index: 0, kind: input, shape index: {}]
  %s1 = inlined_call_operand.vmem [shape: s32[1,640], index: 1, kind: input, shape index: {}]
  %s2 = inlined_call_operand.vmem [shape: f32[384,64], index: 2, kind: input, shape index: {}]
  %s3 = inlined_call_operand.vmem [shape: f32[64,640], index: 3, kind: input, shape index: {}]
  %s4 = inlined_call_operand.vmem [shape: f32[384,1], index: 4, kind: output, shape index: {}]
  %s5 = sld [smem:[#allocation0]]
  $region95: #{tpu_custom_call.1} parent=0
    _
  %s7 = ssub.s32 1, %s5
  %s8 = scalar_select 0, %s7, %s5
  $region1: #{tpu_custom_call.1} parent=0
    #allocation6 [shape = 'u8[65536]{0}', space=vmem, size = 0x10000, scoped, tag = 'input window, operand 3']
    loop: start=0, step=1, limit=17
    $region2: #{tpu_custom_call.1} parent=1 // loop_pre_header
      _
    $region3: #{tpu_custom_call.1} parent=1 // loop_header
      %s10 = sphi 0, %s14
      %p11 = scmp.ge.s32.totalorder %s10, 17
      %s17 = sphi 0, %s29
      %s18 = sphi 0, %s25
      %s19 = sphi 0, %s17
      %s20 = sphi 0, %s18
      %s21 = sphi 0, %s19
      %s22 = sphi 0, %s20
      %s32 = sphi 0, %s34
      %s35 = sphi 0, %s32
      %s36 = sphi 0, %s35
      %s52 = sphi 0, %s36
      %s58 = sphi 0, %s60
      %s61 = sphi 0, %s58
      %s62 = sphi 0, %s61
      %s78 = sphi 0, %s62
      %s84 = sphi 0, %s86
      %s87 = sphi 0, %s84
      %s88 = sphi 0, %s87
      %s104 = sphi 0, %s88
      %s110 = sphi 0, %s112
      %s113 = sphi 0, %s110
      %s114 = sphi 0, %s113
      %s130 = sphi 0, %s114
      %s136 = sphi 0, %s138
      %s139 = sphi 0, %s136
      %s140 = sphi 0, %s139
      %s156 = sphi 0, %s140
    $region4: #{tpu_custom_call.1} parent=1 // loop_header_branch
      %13 = sbr.rel (%p11) target = $region8
    $region5: #{tpu_custom_call.1} parent=1 // loop_body
      %s15 = ssub.s32 %s10, 1
      %s16 = ssub.s32 %s10, 2
      %s23 = sadd.s32 1, %s18
      %p24 = scmp.ge.s32.totalorder %s23, 5
      %s25 = scalar_select %p24, 0, %s23
      %s26 = sadd.s32 1, %s17
      %s27 = scalar_select %p24, %s26, %s17
      %p28 = scmp.ge.s32.totalorder %s27, 3
      %s29 = scalar_select %p28, 0, %s27
      %s30 = ssub.s32 %s17, %s29
      %p31 = scmp.eq.s32.totalorder %s30, 0
      %s33 = sadd.s32 %s32, 1
      %s34 = scalar_select %p31, %s32, %s33
      %p37 = pneg %p31
      %p38 = scmp.eq.s32.totalorder %s10, 14
      %p39 = por %p37, %p38
      %p40 = scmp.ne.s32.totalorder %s32, %s35
      %p41 = scmp.eq.s32.totalorder %s10, 0
      %p42 = por %p40, %p41
      %p43 = scmp.ne.s32.totalorder %s32, %s35
      %p44 = scmp.eq.s32.totalorder %s15, 14
      %p45 = por %p43, %p44
      %p46 = scmp.ne.s32.totalorder %s35, %s36
      %p47 = scmp.eq.s32.totalorder %s15, 0
      %p48 = por %p46, %p47
      %p49 = scmp.ne.s32.totalorder %s35, %s36
      %p50 = scmp.eq.s32.totalorder %s16, 14
      %p51 = por %p49, %p50
      %p53 = scmp.ne.s32.totalorder %s36, %s52
      %p54 = scmp.eq.s32.totalorder %s16, 0
      %p55 = por %p53, %p54
      %s56 = ssub.s32 %s18, %s25
      %p57 = scmp.eq.s32.totalorder %s56, 0
      %s59 = sadd.s32 %s58, 1
      %s60 = scalar_select %p57, %s58, %s59
      %p63 = pneg %p57
      %p64 = scmp.eq.s32.totalorder %s10, 14
      %p65 = por %p63, %p64
      %p66 = scmp.ne.s32.totalorder %s58, %s61
      %p67 = scmp.eq.s32.totalorder %s10, 0
      %p68 = por %p66, %p67
      %p69 = scmp.ne.s32.totalorder %s58, %s61
      %p70 = scmp.eq.s32.totalorder %s15, 14
      %p71 = por %p69, %p70
      %p72 = scmp.ne.s32.totalorder %s61, %s62
      %p73 = scmp.eq.s32.totalorder %s15, 0
      %p74 = por %p72, %p73
      %p75 = scmp.ne.s32.totalorder %s61, %s62
      %p76 = scmp.eq.s32.totalorder %s16, 14
      %p77 = por %p75, %p76
      %p79 = scmp.ne.s32.totalorder %s62, %s78
      %p80 = scmp.eq.s32.totalorder %s16, 0
      %p81 = por %p79, %p80
      %s82 = ssub.s32 %s17, %s29
      %p83 = scmp.eq.s32.totalorder %s82, 0
      %s85 = sadd.s32 %s84, 1
      %s86 = scalar_select %p83, %s84, %s85
      %p89 = pneg %p83
      %p90 = scmp.eq.s32.totalorder %s10, 14
      %p91 = por %p89, %p90
      %p92 = scmp.ne.s32.totalorder %s84, %s87
      %p93 = scmp.eq.s32.totalorder %s10, 0
      %p94 = por %p92, %p93
      %p95 = scmp.ne.s32.totalorder %s84, %s87
      %p96 = scmp.eq.s32.totalorder %s15, 14
      %p97 = por %p95, %p96
      %p98 = scmp.ne.s32.totalorder %s87, %s88
      %p99 = scmp.eq.s32.totalorder %s15, 0
      %p100 = por %p98, %p99
      %p101 = scmp.ne.s32.totalorder %s87, %s88
      %p102 = scmp.eq.s32.totalorder %s16, 14
      %p103 = por %p101, %p102
      %p105 = scmp.ne.s32.totalorder %s88, %s104
      %p106 = scmp.eq.s32.totalorder %s16, 0
      %p107 = por %p105, %p106
      %s108 = ssub.s32 %s18, %s25
      %p109 = scmp.eq.s32.totalorder %s108, 0
      %s111 = sadd.s32 %s110, 1
      %s112 = scalar_select %p109, %s110, %s111
      %p115 = pneg %p109
      %p116 = scmp.eq.s32.totalorder %s10, 14
      %p117 = por %p115, %p116
      %p118 = scmp.ne.s32.totalorder %s110, %s113
      %p119 = scmp.eq.s32.totalorder %s10, 0
      %p120 = por %p118, %p119
      %p121 = scmp.ne.s32.totalorder %s110, %s113
      %p122 = scmp.eq.s32.totalorder %s15, 14
      %p123 = por %p121, %p122
      %p124 = scmp.ne.s32.totalorder %s113, %s114
      %p125 = scmp.eq.s32.totalorder %s15, 0
      %p126 = por %p124, %p125
      %p127 = scmp.ne.s32.totalorder %s113, %s114
      %p128 = scmp.eq.s32.totalorder %s16, 14
      %p129 = por %p127, %p128
      %p131 = scmp.ne.s32.totalorder %s114, %s130
      %p132 = scmp.eq.s32.totalorder %s16, 0
      %p133 = por %p131, %p132
      %s134 = ssub.s32 %s17, %s29
      %p135 = scmp.eq.s32.totalorder %s134, 0
      %s137 = sadd.s32 %s136, 1
      %s138 = scalar_select %p135, %s136, %s137
      %p141 = pneg %p135
      %p142 = scmp.eq.s32.totalorder %s10, 14
      %p143 = por %p141, %p142
      %p144 = scmp.ne.s32.totalorder %s136, %s139
      %p145 = scmp.eq.s32.totalorder %s10, 0
      %p146 = por %p144, %p145
      %p147 = scmp.ne.s32.totalorder %s136, %s139
      %p148 = scmp.eq.s32.totalorder %s15, 14
      %p149 = por %p147, %p148
      %p150 = scmp.ne.s32.totalorder %s139, %s140
      %p151 = scmp.eq.s32.totalorder %s15, 0
      %p152 = por %p150, %p151
      %p153 = scmp.ne.s32.totalorder %s139, %s140
      %p154 = scmp.eq.s32.totalorder %s16, 14
      %p155 = por %p153, %p154
      %p157 = scmp.ne.s32.totalorder %s140, %s156
      %p158 = scmp.eq.s32.totalorder %s16, 0
      %p159 = por %p157, %p158
      %p160 = scmp.le.s32.totalorder 1, %s10
      %p161 = scmp.lt.s32.totalorder %s10, 16
      %p162 = pnand %p160, %p161
      %p163 = pneg %p162
      // Predicated region
      $region9: #{tpu_custom_call.1} parent=5 // pred_check
        _
      $region10: #{tpu_custom_call.1} parent=5 // pred_check_branch
        %165 = sbr.rel (%p162) target = $region12
      $region11: #{tpu_custom_call.1} parent=5 // pred_region
        %s166 = ssub.s32 %s10, 1
      $region12: #{tpu_custom_call.1} parent=5 // pred_fallthru
        _
      %p167 = scmp.lt.s32.totalorder %s10, 15
      // Predicated region
      $region13: #{tpu_custom_call.1} parent=5 // pred_check
        %p168 = pneg %p167
      $region14: #{tpu_custom_call.1} parent=5 // pred_check_branch
        %170 = sbr.rel (%p168) target = $region16
      $region15: #{tpu_custom_call.1} parent=5 // pred_region
        // Predicated region
        $region17: #{tpu_custom_call.1} parent=15 // pred_check
          %p171 = pneg %p42
        $region18: #{tpu_custom_call.1} parent=15 // pred_check_branch
          %173 = sbr.rel (%p171) target = $region20
        $region19: #{tpu_custom_call.1} parent=15 // pred_region
          %s174 = smul.u32 16, %s17
          %p175 = scmp.lt.s32.totalorder %s174, 47
          %s176 = scalar_select %p175, %s174, 47
          %s177 = smul.addr %s176, 8
          %s178 = scalar_lea.vmem %s0, %s177
          %s179 = smul.u32 16, %s17
        $region20: #{tpu_custom_call.1} parent=15 // pred_fallthru
          _
        // Predicated region
        $region21: #{tpu_custom_call.1} parent=15 // pred_check
          %p180 = pneg %p68
        $region22: #{tpu_custom_call.1} parent=15 // pred_check_branch
          %182 = sbr.rel (%p180) target = $region24
        $region23: #{tpu_custom_call.1} parent=15 // pred_region
          %p183 = scmp.lt.s32.totalorder %s18, 4
          %s184 = scalar_select %p183, %s18, 4
          %s185 = scalar_lea.vmem %s1, %s184
        $region24: #{tpu_custom_call.1} parent=15 // pred_fallthru
          _
        // Predicated region
        $region25: #{tpu_custom_call.1} parent=15 // pred_check
          %p186 = pneg %p94
        $region26: #{tpu_custom_call.1} parent=15 // pred_check_branch
          %188 = sbr.rel (%p186) target = $region28
        $region27: #{tpu_custom_call.1} parent=15 // pred_region
          %s189 = smul.u32 16, %s17
          %p190 = scmp.lt.s32.totalorder %s189, 47
          %s191 = scalar_select %p190, %s189, 47
          %s192 = smul.addr %s191, 8
          %s193 = scalar_lea.vmem %s2, %s192
          %s194 = smul.u32 16, %s17
        $region28: #{tpu_custom_call.1} parent=15 // pred_fallthru
          _
        // Predicated region
        $region29: #{tpu_custom_call.1} parent=15 // pred_check
          %p195 = pneg %p120
        $region30: #{tpu_custom_call.1} parent=15 // pred_check_branch
          %197 = sbr.rel (%p195) target = $region32
        $region31: #{tpu_custom_call.1} parent=15 // pred_region
          %s198 = sand.u32 %s110, 1
          %s199 = sand.u32 %s110, 1
          %s200 = smul.addr %s199, 64
          %s201 = scalar_lea.vmem [#allocation6], %s200
          %s202 = smul.addr %s18, 8
          %s203 = scalar_lea.vmem %s3, %s202
          // Predicated region
          $region33: #{tpu_custom_call.1} parent=31 // pred_check
            _
          $region34: #{tpu_custom_call.1} parent=31 // pred_check_branch
            %205 = sbr.rel (0) target = $region36
          $region35: #{tpu_custom_call.1} parent=31 // pred_region
            // Predicated region
            $region37: #{tpu_custom_call.1} parent=35 // pred_check
              _
            $region38: #{tpu_custom_call.1} parent=35 // pred_check_branch
              %207 = sbr.rel (0) target = $region40
            $region39: #{tpu_custom_call.1} parent=35 // pred_region
              // Predicated region
              $region52: #{tpu_custom_call.1} parent=39 // pred_check
                _
              $region53: #{tpu_custom_call.1} parent=39 // pred_check_branch
                %237 = sbr.rel (0) target = $region55
              $region54: #{tpu_custom_call.1} parent=39 // pred_region
                loop: start=0, step=1, limit=1
                $region56: #{tpu_custom_call.1} parent=54 // loop_pre_header
                  _
                $region57: #{tpu_custom_call.1} parent=54 // loop_header
                  %s239 = sphi 0, %s243
                  %p240 = scmp.ge.s32.totalorder %s239, 1
                  %s244 = sphi %s203, %s203
                  %s245 = sphi %s201, %s201
                $region58: #{tpu_custom_call.1} parent=54 // loop_header_branch
                  %242 = sbr.rel (%p240) target = $region62
                $region59: #{tpu_custom_call.1} parent=54 // loop_body
                  %v246 = vld [vmem:[%s244] sm:$0xff]
                  %247 = vst [vmem:[%s245] sm:$0xff] %v246
                  %v248 = vld [vmem:[%s244 + $0x28] sm:$0xff]
                  %249 = vst [vmem:[%s245 + $0x8] sm:$0xff] %v248
                  %v250 = vld [vmem:[%s244 + $0x50] sm:$0xff]
                  %251 = vst [vmem:[%s245 + $0x10] sm:$0xff] %v250
                  %v252 = vld [vmem:[%s244 + $0x78] sm:$0xff]
                  %253 = vst [vmem:[%s245 + $0x18] sm:$0xff] %v252
                  %v254 = vld [vmem:[%s244 + $0xa0] sm:$0xff]
                  %255 = vst [vmem:[%s245 + $0x20] sm:$0xff] %v254
                  %v256 = vld [vmem:[%s244 + $0xc8] sm:$0xff]
                  %257 = vst [vmem:[%s245 + $0x28] sm:$0xff] %v256
                  %v258 = vld [vmem:[%s244 + $0xf0] sm:$0xff]
                  %259 = vst [vmem:[%s245 + $0x30] sm:$0xff] %v258
                  %v260 = vld [vmem:[%s244 + $0x118] sm:$0xff]
                  %261 = vst [vmem:[%s245 + $0x38] sm:$0xff] %v260
                $region60: #{tpu_custom_call.1} parent=54 // loop_footer
                  %s243 = sadd.s32 1, %s239
                $region61: #{tpu_custom_call.1} parent=54 // loop_footer_branch
                  %238 = sbr.rel target = $region57
                $region62: #{tpu_custom_call.1} parent=54 // loop_exit
                  _
              $region55: #{tpu_custom_call.1} parent=39 // pred_fallthru
                _
              // Predicated region
              $region63: #{tpu_custom_call.1} parent=39 // pred_check
                _
              $region64: #{tpu_custom_call.1} parent=39 // pred_check_branch
                %263 = sbr.rel target = $region66
              $region65: #{tpu_custom_call.1} parent=39 // pred_region
                _
              $region66: #{tpu_custom_call.1} parent=39 // pred_fallthru
                _
            $region40: #{tpu_custom_call.1} parent=35 // pred_fallthru
              _
            // Predicated region
            $region41: #{tpu_custom_call.1} parent=35 // pred_check
              _
            $region42: #{tpu_custom_call.1} parent=35 // pred_check_branch
              %209 = sbr.rel target = $region44
            $region43: #{tpu_custom_call.1} parent=35 // pred_region
              %s211 = ssub.s32 256, 1
              loop: start=0, step=1, limit=1
              $region45: #{tpu_custom_call.1} parent=43 // loop_pre_header
                _
              $region46: #{tpu_custom_call.1} parent=43 // loop_header
                %s213 = sphi 0, %s217
                %p214 = scmp.ge.s32.totalorder %s213, 1
                %s218 = sphi %s203, %s203
                %s219 = sphi %s201, %s201
              $region47: #{tpu_custom_call.1} parent=43 // loop_header_branch
                %216 = sbr.rel (%p214) target = $region51
              $region48: #{tpu_custom_call.1} parent=43 // loop_body
                %v220 = vld [vmem:[%s218] sm:%s211]
                %221 = vst [vmem:[%s219] sm:%s211] %v220
                %v222 = vld [vmem:[%s218 + $0x28] sm:%s211]
                %223 = vst [vmem:[%s219 + $0x8] sm:%s211] %v222
                %v224 = vld [vmem:[%s218 + $0x50] sm:%s211]
                %225 = vst [vmem:[%s219 + $0x10] sm:%s211] %v224
                %v226 = vld [vmem:[%s218 + $0x78] sm:%s211]
                %227 = vst [vmem:[%s219 + $0x18] sm:%s211] %v226
                %v228 = vld [vmem:[%s218 + $0xa0] sm:%s211]
                %229 = vst [vmem:[%s219 + $0x20] sm:%s211] %v228
                %v230 = vld [vmem:[%s218 + $0xc8] sm:%s211]
                %231 = vst [vmem:[%s219 + $0x28] sm:%s211] %v230
                %v232 = vld [vmem:[%s218 + $0xf0] sm:%s211]
                %233 = vst [vmem:[%s219 + $0x30] sm:%s211] %v232
                %v234 = vld [vmem:[%s218 + $0x118] sm:%s211]
                %235 = vst [vmem:[%s219 + $0x38] sm:%s211] %v234
              $region49: #{tpu_custom_call.1} parent=43 // loop_footer
                %s217 = sadd.s32 1, %s213
              $region50: #{tpu_custom_call.1} parent=43 // loop_footer_branch
                %212 = sbr.rel target = $region46
              $region51: #{tpu_custom_call.1} parent=43 // loop_exit
                _
            $region44: #{tpu_custom_call.1} parent=35 // pred_fallthru
              _
          $region36: #{tpu_custom_call.1} parent=31 // pred_fallthru
            _
          %264 = vnop
        $region32: #{tpu_custom_call.1} parent=15 // pred_fallthru
          _
      $region16: #{tpu_custom_call.1} parent=5 // pred_fallthru
        _
      %p265 = scmp.le.s32.totalorder 1, %s10
      %p266 = scmp.lt.s32.totalorder %s10, 16
      %p267 = pnand %p265, %p266
      %p268 = pneg %p267
      // Predicated region
      $region67: #{tpu_custom_call.1} parent=5 // pred_check
        _
      $region68: #{tpu_custom_call.1} parent=5 // pred_check_branch
        %270 = sbr.rel (%p267) target = $region70
      $region69: #{tpu_custom_call.1} parent=5 // pred_region
        %s271 = ssub.s32 %s10, 1
        %s272 = sand.u32 %s113, 1
        %s273 = sand.u32 %s113, 1
        %s274 = smul.addr %s273, 64
        %s275 = scalar_lea.vmem [#allocation6], %s274
        // Predicated region
        $region71: #{tpu_custom_call.1} parent=69 // pred_check
          %p276 = pneg %p126
        $region72: #{tpu_custom_call.1} parent=69 // pred_check_branch
          %278 = sbr.rel (%p276) target = $region74
        $region73: #{tpu_custom_call.1} parent=69 // pred_region
          _
        $region74: #{tpu_custom_call.1} parent=69 // pred_fallthru
          _
        %s279 = smul.u32 16, %s19
        %p280 = scmp.lt.s32.totalorder %s279, 47
        %s281 = scalar_select %p280, %s279, 47
        %s282 = smul.addr %s281, 8
        %s283 = scalar_lea.vmem %s0, %s282
        %p284 = pneg %p48
        %p285 = pneg %p45
        %p286 = scmp.lt.s32.totalorder %s20, 4
        %s287 = scalar_select %p286, %s20, 4
        %s288 = scalar_lea.vmem %s1, %s287
        %p289 = pneg %p74
        %p290 = pneg %p71
        %s291 = smul.u32 16, %s19
        %p292 = scmp.lt.s32.totalorder %s291, 47
        %s293 = scalar_select %p292, %s291, 47
        %s294 = smul.addr %s293, 8
        %s295 = scalar_lea.vmem %s2, %s294
        %p296 = pneg %p100
        %p297 = pneg %p97
        %s298 = sand.u32 %s113, 1
        %s299 = sand.u32 %s113, 1
        %s300 = smul.addr %s299, 64
        %s301 = scalar_lea.vmem [#allocation6], %s300
        %p302 = pneg %p126
        %p303 = pneg %p123
        %p304 = pneg %p152
        %p305 = pneg %p149
        %s306 = smul.u32 16, %s19
        %p307 = scmp.lt.s32.totalorder %s306, 47
        %s308 = scalar_select %p307, %s306, 47
        %s309 = smul.addr %s308, 8
        %s310 = scalar_lea.vmem %s4, %s309
        %s311 = smul.u32 16, %s19
        %p312 = scmp.lt.s32.totalorder %s311, 47
        %s313 = scalar_select %p312, %s311, 47
        %s314 = smul.addr %s313, 8
        %s315 = scalar_lea.vmem %s0, %s314
        %s316 = smul.u32 16, %s19
        %p317 = scmp.lt.s32.totalorder %s20, 4
        %s318 = scalar_select %p317, %s20, 4
        %s319 = scalar_lea.vmem %s1, %s318
        %s320 = smul.u32 16, %s19
        %p321 = scmp.lt.s32.totalorder %s320, 47
        %s322 = scalar_select %p321, %s320, 47
        %s323 = smul.addr %s322, 8
        %s324 = scalar_lea.vmem %s2, %s323
        %s325 = smul.u32 16, %s19
        %s326 = smul.u32 16, %s19
        %p327 = scmp.lt.s32.totalorder %s326, 47
        %s328 = scalar_select %p327, %s326, 47
        %s329 = smul.addr %s328, 8
        %s330 = scalar_lea.vmem %s4, %s329
        %s331 = smul.u32 16, %s19
        %p332 = scmp.eq.s32.totalorder %s20, 0
        // Predicated region
        $region75: #{tpu_custom_call.1} parent=69 // pred_check
          %p333 = pneg %p332
        $region76: #{tpu_custom_call.1} parent=69 // pred_check_branch
          %335 = sbr.rel (%p333) target = $region78
        $region77: #{tpu_custom_call.1} parent=69 // pred_region
          %vm336 = vcmask 7168
          %337 = vst.msk [vmem:[#allocation2] sm:$0xff] %vm336, -inf
          %338 = vst.msk [vmem:[#allocation2 + $0x8] sm:$0xff] %vm336, -inf
          %339 = vst.msk [vmem:[#allocation2 + $0x10] sm:$0xff] %vm336, -inf
          %340 = vst.msk [vmem:[#allocation2 + $0x18] sm:$0xff] %vm336, -inf
          %341 = vst.msk [vmem:[#allocation2 + $0x20] sm:$0xff] %vm336, -inf
          %342 = vst.msk [vmem:[#allocation2 + $0x28] sm:$0xff] %vm336, -inf
          %343 = vst.msk [vmem:[#allocation2 + $0x30] sm:$0xff] %vm336, -inf
          %344 = vst.msk [vmem:[#allocation2 + $0x38] sm:$0xff] %vm336, -inf
          %345 = vst.msk [vmem:[#allocation2 + $0x40] sm:$0xff] %vm336, -inf
          %346 = vst.msk [vmem:[#allocation2 + $0x48] sm:$0xff] %vm336, -inf
          %347 = vst.msk [vmem:[#allocation2 + $0x50] sm:$0xff] %vm336, -inf
          %348 = vst.msk [vmem:[#allocation2 + $0x58] sm:$0xff] %vm336, -inf
          %349 = vst.msk [vmem:[#allocation2 + $0x60] sm:$0xff] %vm336, -inf
          %350 = vst.msk [vmem:[#allocation2 + $0x68] sm:$0xff] %vm336, -inf
          %351 = vst.msk [vmem:[#allocation2 + $0x70] sm:$0xff] %vm336, -inf
          %352 = vst.msk [vmem:[#allocation2 + $0x78] sm:$0xff] %vm336, -inf
          %353 = vst.msk [vmem:[#allocation3] sm:$0xff] %vm336, 0.0
          %354 = vst.msk [vmem:[#allocation3 + $0x8] sm:$0xff] %vm336, 0.0
          %355 = vst.msk [vmem:[#allocation3 + $0x10] sm:$0xff] %vm336, 0.0
          %356 = vst.msk [vmem:[#allocation3 + $0x18] sm:$0xff] %vm336, 0.0
          %357 = vst.msk [vmem:[#allocation3 + $0x20] sm:$0xff] %vm336, 0.0
          %358 = vst.msk [vmem:[#allocation3 + $0x28] sm:$0xff] %vm336, 0.0
          %359 = vst.msk [vmem:[#allocation3 + $0x30] sm:$0xff] %vm336, 0.0
          %360 = vst.msk [vmem:[#allocation3 + $0x38] sm:$0xff] %vm336, 0.0
          %361 = vst.msk [vmem:[#allocation3 + $0x40] sm:$0xff] %vm336, 0.0
          %362 = vst.msk [vmem:[#allocation3 + $0x48] sm:$0xff] %vm336, 0.0
          %363 = vst.msk [vmem:[#allocation3 + $0x50] sm:$0xff] %vm336, 0.0
          %364 = vst.msk [vmem:[#allocation3 + $0x58] sm:$0xff] %vm336, 0.0
          %365 = vst.msk [vmem:[#allocation3 + $0x60] sm:$0xff] %vm336, 0.0
          %366 = vst.msk [vmem:[#allocation3 + $0x68] sm:$0xff] %vm336, 0.0
          %367 = vst.msk [vmem:[#allocation3 + $0x70] sm:$0xff] %vm336, 0.0
          %368 = vst.msk [vmem:[#allocation3 + $0x78] sm:$0xff] %vm336, 0.0
          %369 = vst.msk [vmem:[#allocation4] sm:$0xff] %vm336, 0.0
          %370 = vst.msk [vmem:[#allocation4 + $0x8] sm:$0xff] %vm336, 0.0
          %371 = vst.msk [vmem:[#allocation4 + $0x10] sm:$0xff] %vm336, 0.0
          %372 = vst.msk [vmem:[#allocation4 + $0x18] sm:$0xff] %vm336, 0.0
          %373 = vst.msk [vmem:[#allocation4 + $0x20] sm:$0xff] %vm336, 0.0
          %374 = vst.msk [vmem:[#allocation4 + $0x28] sm:$0xff] %vm336, 0.0
          %375 = vst.msk [vmem:[#allocation4 + $0x30] sm:$0xff] %vm336, 0.0
          %376 = vst.msk [vmem:[#allocation4 + $0x38] sm:$0xff] %vm336, 0.0
          %377 = vst.msk [vmem:[#allocation4 + $0x40] sm:$0xff] %vm336, 0.0
          %378 = vst.msk [vmem:[#allocation4 + $0x48] sm:$0xff] %vm336, 0.0
          %379 = vst.msk [vmem:[#allocation4 + $0x50] sm:$0xff] %vm336, 0.0
          %380 = vst.msk [vmem:[#allocation4 + $0x58] sm:$0xff] %vm336, 0.0
          %381 = vst.msk [vmem:[#allocation4 + $0x60] sm:$0xff] %vm336, 0.0
          %382 = vst.msk [vmem:[#allocation4 + $0x68] sm:$0xff] %vm336, 0.0
          %383 = vst.msk [vmem:[#allocation4 + $0x70] sm:$0xff] %vm336, 0.0
          %384 = vst.msk [vmem:[#allocation4 + $0x78] sm:$0xff] %vm336, 0.0
          %385 = vst.msk [vmem:[#allocation5] sm:$0xff] %vm336, 0.0
          %386 = vst.msk [vmem:[#allocation5 + $0x8] sm:$0xff] %vm336, 0.0
          %387 = vst.msk [vmem:[#allocation5 + $0x10] sm:$0xff] %vm336, 0.0
          %388 = vst.msk [vmem:[#allocation5 + $0x18] sm:$0xff] %vm336, 0.0
          %389 = vst.msk [vmem:[#allocation5 + $0x20] sm:$0xff] %vm336, 0.0
          %390 = vst.msk [vmem:[#allocation5 + $0x28] sm:$0xff] %vm336, 0.0
          %391 = vst.msk [vmem:[#allocation5 + $0x30] sm:$0xff] %vm336, 0.0
          %392 = vst.msk [vmem:[#allocation5 + $0x38] sm:$0xff] %vm336, 0.0
          %393 = vst.msk [vmem:[#allocation5 + $0x40] sm:$0xff] %vm336, 0.0
          %394 = vst.msk [vmem:[#allocation5 + $0x48] sm:$0xff] %vm336, 0.0
          %395 = vst.msk [vmem:[#allocation5 + $0x50] sm:$0xff] %vm336, 0.0
          %396 = vst.msk [vmem:[#allocation5 + $0x58] sm:$0xff] %vm336, 0.0
          %397 = vst.msk [vmem:[#allocation5 + $0x60] sm:$0xff] %vm336, 0.0
          %398 = vst.msk [vmem:[#allocation5 + $0x68] sm:$0xff] %vm336, 0.0
          %399 = vst.msk [vmem:[#allocation5 + $0x70] sm:$0xff] %vm336, 0.0
          %400 = vst.msk [vmem:[#allocation5 + $0x78] sm:$0xff] %vm336, 0.0
        $region78: #{tpu_custom_call.1} parent=69 // pred_fallthru
          _
        %v401 = vld [vmem:[%s324] sm:$0xff]
        %v402 = vld [vmem:[%s324 + $0x8] sm:$0xff]
        %v403 = vld [vmem:[%s324 + $0x10] sm:$0xff]
        %v404 = vld [vmem:[%s324 + $0x18] sm:$0xff]
        %v405 = vld [vmem:[%s324 + $0x20] sm:$0xff]
        %v406 = vld [vmem:[%s324 + $0x28] sm:$0xff]
        %v407 = vld [vmem:[%s324 + $0x30] sm:$0xff]
        %v408 = vld [vmem:[%s324 + $0x38] sm:$0xff]
        %v409 = vld [vmem:[%s324 + $0x40] sm:$0xff]
        %v410 = vld [vmem:[%s324 + $0x48] sm:$0xff]
        %v411 = vld [vmem:[%s324 + $0x50] sm:$0xff]
        %v412 = vld [vmem:[%s324 + $0x58] sm:$0xff]
        %v413 = vld [vmem:[%s324 + $0x60] sm:$0xff]
        %v414 = vld [vmem:[%s324 + $0x68] sm:$0xff]
        %v415 = vld [vmem:[%s324 + $0x70] sm:$0xff]
        %v416 = vld [vmem:[%s324 + $0x78] sm:$0xff]
        %v417 = vmul.f32 %v401, 10.0
        %v418 = vmul.f32 %v402, 10.0
        %v419 = vmul.f32 %v403, 10.0
        %v420 = vmul.f32 %v404, 10.0
        %v421 = vmul.f32 %v405, 10.0
        %v422 = vmul.f32 %v406, 10.0
        %v423 = vmul.f32 %v407, 10.0
        %v424 = vmul.f32 %v408, 10.0
        %v425 = vmul.f32 %v409, 10.0
        %v426 = vmul.f32 %v410, 10.0
        %v427 = vmul.f32 %v411, 10.0
        %v428 = vmul.f32 %v412, 10.0
        %v429 = vmul.f32 %v413, 10.0
        %v430 = vmul.f32 %v414, 10.0
        %v431 = vmul.f32 %v415, 10.0
        %v432 = vmul.f32 %v416, 10.0
        %v433 = vld [vmem:[%s275] sm:$0xff]
        %v434 = vld [vmem:[%s275 + $0x8] sm:$0xff]
        %v435 = vld [vmem:[%s275 + $0x10] sm:$0xff]
        %v436 = vld [vmem:[%s275 + $0x18] sm:$0xff]
        %v437 = vld [vmem:[%s275 + $0x20] sm:$0xff]
        %v438 = vld [vmem:[%s275 + $0x28] sm:$0xff]
        %v439 = vld [vmem:[%s275 + $0x30] sm:$0xff]
        %v440 = vld [vmem:[%s275 + $0x38] sm:$0xff]
        %vm441 = vcmask 523264
        %v443 = vsel %vm441, %v417, 0
        %v446 = vsel %vm441, %v418, 0
        %v449 = vsel %vm441, %v419, 0
        %v452 = vsel %vm441, %v420, 0
        %v455 = vsel %vm441, %v421, 0
        %v458 = vsel %vm441, %v422, 0
        %v461 = vsel %vm441, %v423, 0
        %v464 = vsel %vm441, %v424, 0
        %v467 = vsel %vm441, %v425, 0
        %v470 = vsel %vm441, %v426, 0
        %v473 = vsel %vm441, %v427, 0
        %v476 = vsel %vm441, %v428, 0
        %v479 = vsel %vm441, %v429, 0
        %v482 = vsel %vm441, %v430, 0
        %v485 = vsel %vm441, %v431, 0
        %v488 = vsel %vm441, %v432, 0
        %490 = vmatprep.subr.mxu0 0.0
        %491 = vmatpush1.msra.mxu0 0.0
        %492 = vmatprep.subr.mxu0 0.0
        %493 = vmatpush1.msra.mxu0 0.0
        %494 = vmatprep.subr.mxu0 0.0
        %495 = vmatpush1.msra.mxu0 0.0
        %496 = vmatprep.subr.mxu0 0.0
        %497 = vmatpush1.msra.mxu0 0.0
        %498 = vmatprep.subr.mxu0 0.0
        %499 = vmatpush1.msra.mxu0 0.0
        %500 = vmatprep.subr.mxu0 0.0
        %501 = vmatpush1.msra.mxu0 0.0
        %502 = vmatprep.subr.mxu0 0.0
        %503 = vmatpush1.msra.mxu0 0.0
        %504 = vmatprep.subr.mxu0 0.0
        %505 = vmatpush1.msra.mxu0 0.0
        %506 = vmatprep.subr.mxu0 0.0
        %507 = vmatpush1.msra.mxu0 %v440
        %508 = vmatprep.subr.mxu0 0.0
        %509 = vmatpush1.msra.mxu0 %v439
        %510 = vmatprep.subr.mxu0 0.0
        %511 = vmatpush1.msra.mxu0 %v438
        %512 = vmatprep.subr.mxu0 0.0
        %513 = vmatpush1.msra.mxu0 %v437
        %514 = vmatprep.subr.mxu0 0.0
        %515 = vmatpush1.msra.mxu0 %v436
        %516 = vmatprep.subr.mxu0 0.0
        %517 = vmatpush1.msra.mxu0 %v435
        %518 = vmatprep.subr.mxu0 0.0
        %519 = vmatpush1.msra.mxu0 %v434
        %520 = vmatprep.subr.mxu0 0.0
        %521 = vmatpush1.msra.mxu0 %v433
        %522 = vmatprep.subr.mxu0 0.0
        %523 = vmatpush2.msra.mxu0 0.0
        %524 = vmatprep.subr.mxu0 0.0
        %525 = vmatpush2.msra.mxu0 0.0
        %526 = vmatprep.subr.mxu0 0.0
        %527 = vmatpush2.msra.mxu0 0.0
        %528 = vmatprep.subr.mxu0 0.0
        %529 = vmatpush2.msra.mxu0 0.0
        %530 = vmatprep.subr.mxu0 0.0
        %531 = vmatpush2.msra.mxu0 0.0
        %532 = vmatprep.subr.mxu0 0.0
        %533 = vmatpush2.msra.mxu0 0.0
        %534 = vmatprep.subr.mxu0 0.0
        %535 = vmatpush2.msra.mxu0 0.0
        %536 = vmatprep.subr.mxu0 0.0
        %537 = vmatpush2.msra.mxu0 0.0
        %538 = vmatprep.subr.mxu0 0.0
        %539 = vmatpush2.msra.mxu0 0.0
        %540 = vmatprep.subr.mxu0 0.0
        %541 = vmatpush2.msra.mxu0 0.0
        %542 = vmatprep.subr.mxu0 0.0
        %543 = vmatpush2.msra.mxu0 0.0
        %544 = vmatprep.subr.mxu0 0.0
        %545 = vmatpush2.msra.mxu0 0.0
        %546 = vmatprep.subr.mxu0 0.0
        %547 = vmatpush2.msra.mxu0 0.0
        %548 = vmatprep.subr.mxu0 0.0
        %549 = vmatpush2.msra.mxu0 0.0
        %550 = vmatprep.subr.mxu0 0.0
        %551 = vmatpush2.msra.mxu0 0.0
        %552 = vmatprep.subr.mxu0 0.0
        %553 = vmatpush2.msra.mxu0 0.0
        %554 = vmatprep.mubr.f32.mxu0 0.0
        %555 = vmatmul.mubr.f32.gmra.mxu0 %v443
        %v556 = vpop.f32.mrf.mxu0
        %v557 = vadd.f32 0.0, %v556
        %v558 = vpop.f32.mrf.mxu0
        %559 = vmatprep.mubr.f32.mxu0 0.0
        %560 = vmatmul.mubr.f32.gmra.mxu0 %v446
        %v561 = vpop.f32.mrf.mxu0
        %v562 = vadd.f32 0.0, %v561
        %v563 = vpop.f32.mrf.mxu0
        %564 = vmatprep.mubr.f32.mxu0 0.0
        %565 = vmatmul.mubr.f32.gmra.mxu0 %v449
        %v566 = vpop.f32.mrf.mxu0
        %v567 = vadd.f32 0.0, %v566
        %v568 = vpop.f32.mrf.mxu0
        %569 = vmatprep.mubr.f32.mxu0 0.0
        %570 = vmatmul.mubr.f32.gmra.mxu0 %v452
        %v571 = vpop.f32.mrf.mxu0
        %v572 = vadd.f32 0.0, %v571
        %v573 = vpop.f32.mrf.mxu0
        %574 = vmatprep.mubr.f32.mxu0 0.0
        %575 = vmatmul.mubr.f32.gmra.mxu0 %v455
        %v576 = vpop.f32.mrf.mxu0
        %v577 = vadd.f32 0.0, %v576
        %v578 = vpop.f32.mrf.mxu0
        %579 = vmatprep.mubr.f32.mxu0 0.0
        %580 = vmatmul.mubr.f32.gmra.mxu0 %v458
        %v581 = vpop.f32.mrf.mxu0
        %v582 = vadd.f32 0.0, %v581
        %v583 = vpop.f32.mrf.mxu0
        %584 = vmatprep.mubr.f32.mxu0 0.0
        %585 = vmatmul.mubr.f32.gmra.mxu0 %v461
        %v586 = vpop.f32.mrf.mxu0
        %v587 = vadd.f32 0.0, %v586
        %v588 = vpop.f32.mrf.mxu0
        %589 = vmatprep.mubr.f32.mxu0 0.0
        %590 = vmatmul.mubr.f32.gmra.mxu0 %v464
        %v591 = vpop.f32.mrf.mxu0
        %v592 = vadd.f32 0.0, %v591
        %v593 = vpop.f32.mrf.mxu0
        %594 = vmatprep.mubr.f32.mxu0 0.0
        %595 = vmatmul.mubr.f32.gmra.mxu0 %v467
        %v596 = vpop.f32.mrf.mxu0
        %v597 = vadd.f32 0.0, %v596
        %v598 = vpop.f32.mrf.mxu0
        %599 = vmatprep.mubr.f32.mxu0 0.0
        %600 = vmatmul.mubr.f32.gmra.mxu0 %v470
        %v601 = vpop.f32.mrf.mxu0
        %v602 = vadd.f32 0.0, %v601
        %v603 = vpop.f32.mrf.mxu0
        %604 = vmatprep.mubr.f32.mxu0 0.0
        %605 = vmatmul.mubr.f32.gmra.mxu0 %v473
        %v606 = vpop.f32.mrf.mxu0
        %v607 = vadd.f32 0.0, %v606
        %v608 = vpop.f32.mrf.mxu0
        %609 = vmatprep.mubr.f32.mxu0 0.0
        %610 = vmatmul.mubr.f32.gmra.mxu0 %v476
        %v611 = vpop.f32.mrf.mxu0
        %v612 = vadd.f32 0.0, %v611
        %v613 = vpop.f32.mrf.mxu0
        %614 = vmatprep.mubr.f32.mxu0 0.0
        %615 = vmatmul.mubr.f32.gmra.mxu0 %v479
        %v616 = vpop.f32.mrf.mxu0
        %v617 = vadd.f32 0.0, %v616
        %v618 = vpop.f32.mrf.mxu0
        %619 = vmatprep.mubr.f32.mxu0 0.0
        %620 = vmatmul.mubr.f32.gmra.mxu0 %v482
        %v621 = vpop.f32.mrf.mxu0
        %v622 = vadd.f32 0.0, %v621
        %v623 = vpop.f32.mrf.mxu0
        %624 = vmatprep.mubr.f32.mxu0 0.0
        %625 = vmatmul.mubr.f32.gmra.mxu0 %v485
        %v626 = vpop.f32.mrf.mxu0
        %v627 = vadd.f32 0.0, %v626
        %v628 = vpop.f32.mrf.mxu0
        %629 = vmatprep.mubr.f32.mxu0 0.0
        %630 = vmatmul.mubr.f32.gmra.mxu0 %v488
        %v631 = vpop.f32.mrf.mxu0
        %v632 = vadd.f32 0.0, %v631
        %v633 = vpop.f32.mrf.mxu0
        %634 = vdwg.mxu0
        %v635 = vld [vmem:[%s315] sm:$0xff]
        %v636 = vld [vmem:[%s315 + $0x8] sm:$0xff]
        %v637 = vld [vmem:[%s315 + $0x10] sm:$0xff]
        %v638 = vld [vmem:[%s315 + $0x18] sm:$0xff]
        %v639 = vld [vmem:[%s315 + $0x20] sm:$0xff]
        %v640 = vld [vmem:[%s315 + $0x28] sm:$0xff]
        %v641 = vld [vmem:[%s315 + $0x30] sm:$0xff]
        %v642 = vld [vmem:[%s315 + $0x38] sm:$0xff]
        %v643 = vld [vmem:[%s315 + $0x40] sm:$0xff]
        %v644 = vld [vmem:[%s315 + $0x48] sm:$0xff]
        %v645 = vld [vmem:[%s315 + $0x50] sm:$0xff]
        %v646 = vld [vmem:[%s315 + $0x58] sm:$0xff]
        %v647 = vld [vmem:[%s315 + $0x60] sm:$0xff]
        %v648 = vld [vmem:[%s315 + $0x68] sm:$0xff]
        %v649 = vld [vmem:[%s315 + $0x70] sm:$0xff]
        %v650 = vld [vmem:[%s315 + $0x78] sm:$0xff]
        %v651 = vld [vmem:[%s319] sm:$0x1]
        %652 = vset.pattern.permute.xlu0 0
        %653 = vperm.xlu0 %652, %v635
        %v654 = vpop.permute.xlu0 %653
        %655 = vset.pattern.permute.xlu0 0
        %656 = vperm.xlu0 %655, %v636
        %v657 = vpop.permute.xlu0 %656
        %658 = vset.pattern.permute.xlu0 0
        %659 = vperm.xlu0 %658, %v637
        %v660 = vpop.permute.xlu0 %659
        %661 = vset.pattern.permute.xlu0 0
        %662 = vperm.xlu0 %661, %v638
        %v663 = vpop.permute.xlu0 %662
        %664 = vset.pattern.permute.xlu0 0
        %665 = vperm.xlu0 %664, %v639
        %v666 = vpop.permute.xlu0 %665
        %667 = vset.pattern.permute.xlu0 0
        %668 = vperm.xlu0 %667, %v640
        %v669 = vpop.permute.xlu0 %668
        %670 = vset.pattern.permute.xlu0 0
        %671 = vperm.xlu0 %670, %v641
        %v672 = vpop.permute.xlu0 %671
        %673 = vset.pattern.permute.xlu0 0
        %674 = vperm.xlu0 %673, %v642
        %v675 = vpop.permute.xlu0 %674
        %676 = vset.pattern.permute.xlu0 0
        %677 = vperm.xlu0 %676, %v643
        %v678 = vpop.permute.xlu0 %677
        %679 = vset.pattern.permute.xlu0 0
        %680 = vperm.xlu0 %679, %v644
        %v681 = vpop.permute.xlu0 %680
        %682 = vset.pattern.permute.xlu0 0
        %683 = vperm.xlu0 %682, %v645
        %v684 = vpop.permute.xlu0 %683
        %685 = vset.pattern.permute.xlu0 0
        %686 = vperm.xlu0 %685, %v646
        %v687 = vpop.permute.xlu0 %686
        %688 = vset.pattern.permute.xlu0 0
        %689 = vperm.xlu0 %688, %v647
        %v690 = vpop.permute.xlu0 %689
        %691 = vset.pattern.permute.xlu0 0
        %692 = vperm.xlu0 %691, %v648
        %v693 = vpop.permute.xlu0 %692
        %694 = vset.pattern.permute.xlu0 0
        %695 = vperm.xlu0 %694, %v649
        %v696 = vpop.permute.xlu0 %695
        %697 = vset.pattern.permute.xlu0 0
        %698 = vperm.xlu0 %697, %v650
        %v699 = vpop.permute.xlu0 %698
        %v700 = vlaneseq
        %v701 = vshrl.u32 %v700, 7
        %v702 = vsub.s32 0, %v701
        %v703 = vrot.slane %v651, %v702
        %vm704 = vcmp.eq.s32.totalorder %v654, %v703
        %vm705 = vcmp.eq.s32.totalorder %v657, %v703
        %vm706 = vcmp.eq.s32.totalorder %v660, %v703
        %vm707 = vcmp.eq.s32.totalorder %v663, %v703
        %vm708 = vcmp.eq.s32.totalorder %v666, %v703
        %vm709 = vcmp.eq.s32.totalorder %v669, %v703
        %vm710 = vcmp.eq.s32.totalorder %v672, %v703
        %vm711 = vcmp.eq.s32.totalorder %v675, %v703
        %vm712 = vcmp.eq.s32.totalorder %v678, %v703
        %vm713 = vcmp.eq.s32.totalorder %v681, %v703
        %vm714 = vcmp.eq.s32.totalorder %v684, %v703
        %vm715 = vcmp.eq.s32.totalorder %v687, %v703
        %vm716 = vcmp.eq.s32.totalorder %v690, %v703
        %vm717 = vcmp.eq.s32.totalorder %v693, %v703
        %vm718 = vcmp.eq.s32.totalorder %v696, %v703
        %vm719 = vcmp.eq.s32.totalorder %v699, %v703
        %v720 = vld [vmem:[#allocation2] sm:$0xff]
        %v721 = vld [vmem:[#allocation2 + $0x8] sm:$0xff]
        %v722 = vld [vmem:[#allocation2 + $0x10] sm:$0xff]
        %v723 = vld [vmem:[#allocation2 + $0x18] sm:$0xff]
        %v724 = vld [vmem:[#allocation2 + $0x20] sm:$0xff]
        %v725 = vld [vmem:[#allocation2 + $0x28] sm:$0xff]
        %v726 = vld [vmem:[#allocation2 + $0x30] sm:$0xff]
        %v727 = vld [vmem:[#allocation2 + $0x38] sm:$0xff]
        %v728 = vld [vmem:[#allocation2 + $0x40] sm:$0xff]
        %v729 = vld [vmem:[#allocation2 + $0x48] sm:$0xff]
        %v730 = vld [vmem:[#allocation2 + $0x50] sm:$0xff]
        %v731 = vld [vmem:[#allocation2 + $0x58] sm:$0xff]
        %v732 = vld [vmem:[#allocation2 + $0x60] sm:$0xff]
        %v733 = vld [vmem:[#allocation2 + $0x68] sm:$0xff]
        %v734 = vld [vmem:[#allocation2 + $0x70] sm:$0xff]
        %v735 = vld [vmem:[#allocation2 + $0x78] sm:$0xff]
        %736 = vmax.xlane.f32.xlu0 %v557
        %v737 = vpop.xlane.xlu0 %736
        %738 = vmax.xlane.f32.xlu0 %v562
        %v739 = vpop.xlane.xlu0 %738
        %740 = vmax.xlane.f32.xlu0 %v567
        %v741 = vpop.xlane.xlu0 %740
        %742 = vmax.xlane.f32.xlu0 %v572
        %v743 = vpop.xlane.xlu0 %742
        %744 = vmax.xlane.f32.xlu0 %v577
        %v745 = vpop.xlane.xlu0 %744
        %746 = vmax.xlane.f32.xlu0 %v582
        %v747 = vpop.xlane.xlu0 %746
        %748 = vmax.xlane.f32.xlu0 %v587
        %v749 = vpop.xlane.xlu0 %748
        %750 = vmax.xlane.f32.xlu0 %v592
        %v751 = vpop.xlane.xlu0 %750
        %752 = vmax.xlane.f32.xlu0 %v597
        %v753 = vpop.xlane.xlu0 %752
        %754 = vmax.xlane.f32.xlu0 %v602
        %v755 = vpop.xlane.xlu0 %754
        %756 = vmax.xlane.f32.xlu0 %v607
        %v757 = vpop.xlane.xlu0 %756
        %758 = vmax.xlane.f32.xlu0 %v612
        %v759 = vpop.xlane.xlu0 %758
        %760 = vmax.xlane.f32.xlu0 %v617
        %v761 = vpop.xlane.xlu0 %760
        %762 = vmax.xlane.f32.xlu0 %v622
        %v763 = vpop.xlane.xlu0 %762
        %764 = vmax.xlane.f32.xlu0 %v627
        %v765 = vpop.xlane.xlu0 %764
        %766 = vmax.xlane.f32.xlu0 %v632
        %v767 = vpop.xlane.xlu0 %766
        %v768 = vmax.f32 %v720, %v737
        %v769 = vmax.f32 %v721, %v739
        %v770 = vmax.f32 %v722, %v741
        %v771 = vmax.f32 %v723, %v743
        %v772 = vmax.f32 %v724, %v745
        %v773 = vmax.f32 %v725, %v747
        %v774 = vmax.f32 %v726, %v749
        %v775 = vmax.f32 %v727, %v751
        %v776 = vmax.f32 %v728, %v753
        %v777 = vmax.f32 %v729, %v755
        %v778 = vmax.f32 %v730, %v757
        %v779 = vmax.f32 %v731, %v759
        %v780 = vmax.f32 %v732, %v761
        %v781 = vmax.f32 %v733, %v763
        %v782 = vmax.f32 %v734, %v765
        %v783 = vmax.f32 %v735, %v767
        %v784 = vsub.f32 %v720, %v768
        %v785 = vsub.f32 %v721, %v769
        %v786 = vsub.f32 %v722, %v770
        %v787 = vsub.f32 %v723, %v771
        %v788 = vsub.f32 %v724, %v772
        %v789 = vsub.f32 %v725, %v773
        %v790 = vsub.f32 %v726, %v774
        %v791 = vsub.f32 %v727, %v775
        %v792 = vsub.f32 %v728, %v776
        %v793 = vsub.f32 %v729, %v777
        %v794 = vsub.f32 %v730, %v778
        %v795 = vsub.f32 %v731, %v779
        %v796 = vsub.f32 %v732, %v780
        %v797 = vsub.f32 %v733, %v781
        %v798 = vsub.f32 %v734, %v782
        %v799 = vsub.f32 %v735, %v783
        %v800 = vmul.f32 %v784, 1.442695
        %v801 = vpow.pop %v800
        %v802 = vmul.f32 %v785, 1.442695
        %v803 = vpow.pop %v802
        %v804 = vmul.f32 %v786, 1.442695
        %v805 = vpow.pop %v804
        %v806 = vmul.f32 %v787, 1.442695
        %v807 = vpow.pop %v806
        %v808 = vmul.f32 %v788, 1.442695
        %v809 = vpow.pop %v808
        %v810 = vmul.f32 %v789, 1.442695
        %v811 = vpow.pop %v810
        %v812 = vmul.f32 %v790, 1.442695
        %v813 = vpow.pop %v812
        %v814 = vmul.f32 %v791, 1.442695
        %v815 = vpow.pop %v814
        %v816 = vmul.f32 %v792, 1.442695
        %v817 = vpow.pop %v816
        %v818 = vmul.f32 %v793, 1.442695
        %v819 = vpow.pop %v818
        %v820 = vmul.f32 %v794, 1.442695
        %v821 = vpow.pop %v820
        %v822 = vmul.f32 %v795, 1.442695
        %v823 = vpow.pop %v822
        %v824 = vmul.f32 %v796, 1.442695
        %v825 = vpow.pop %v824
        %v826 = vmul.f32 %v797, 1.442695
        %v827 = vpow.pop %v826
        %v828 = vmul.f32 %v798, 1.442695
        %v829 = vpow.pop %v828
        %v830 = vmul.f32 %v799, 1.442695
        %v831 = vpow.pop %v830
        %833 = vset.pattern.permute.xlu0 0
        %834 = vperm.xlu0 %833, %v768
        %v835 = vpop.permute.xlu0 %834
        %838 = vset.pattern.permute.xlu0 0
        %839 = vperm.xlu0 %838, %v769
        %v840 = vpop.permute.xlu0 %839
        %843 = vset.pattern.permute.xlu0 0
        %844 = vperm.xlu0 %843, %v770
        %v845 = vpop.permute.xlu0 %844
        %848 = vset.pattern.permute.xlu0 0
        %849 = vperm.xlu0 %848, %v771
        %v850 = vpop.permute.xlu0 %849
        %853 = vset.pattern.permute.xlu0 0
        %854 = vperm.xlu0 %853, %v772
        %v855 = vpop.permute.xlu0 %854
        %858 = vset.pattern.permute.xlu0 0
        %859 = vperm.xlu0 %858, %v773
        %v860 = vpop.permute.xlu0 %859
        %863 = vset.pattern.permute.xlu0 0
        %864 = vperm.xlu0 %863, %v774
        %v865 = vpop.permute.xlu0 %864
        %868 = vset.pattern.permute.xlu0 0
        %869 = vperm.xlu0 %868, %v775
        %v870 = vpop.permute.xlu0 %869
        %873 = vset.pattern.permute.xlu0 0
        %874 = vperm.xlu0 %873, %v776
        %v875 = vpop.permute.xlu0 %874
        %878 = vset.pattern.permute.xlu0 0
        %879 = vperm.xlu0 %878, %v777
        %v880 = vpop.permute.xlu0 %879
        %883 = vset.pattern.permute.xlu0 0
        %884 = vperm.xlu0 %883, %v778
        %v885 = vpop.permute.xlu0 %884
        %888 = vset.pattern.permute.xlu0 0
        %889 = vperm.xlu0 %888, %v779
        %v890 = vpop.permute.xlu0 %889
        %893 = vset.pattern.permute.xlu0 0
        %894 = vperm.xlu0 %893, %v780
        %v895 = vpop.permute.xlu0 %894
        %898 = vset.pattern.permute.xlu0 0
        %899 = vperm.xlu0 %898, %v781
        %v900 = vpop.permute.xlu0 %899
        %903 = vset.pattern.permute.xlu0 0
        %904 = vperm.xlu0 %903, %v782
        %v905 = vpop.permute.xlu0 %904
        %908 = vset.pattern.permute.xlu0 0
        %909 = vperm.xlu0 %908, %v783
        %v910 = vpop.permute.xlu0 %909
        %v912 = vsub.f32 %v557, %v835
        %v913 = vsub.f32 %v562, %v840
        %v914 = vsub.f32 %v567, %v845
        %v915 = vsub.f32 %v572, %v850
        %v916 = vsub.f32 %v577, %v855
        %v917 = vsub.f32 %v582, %v860
        %v918 = vsub.f32 %v587, %v865
        %v919 = vsub.f32 %v592, %v870
        %v920 = vsub.f32 %v597, %v875
        %v921 = vsub.f32 %v602, %v880
        %v922 = vsub.f32 %v607, %v885
        %v923 = vsub.f32 %v612, %v890
        %v924 = vsub.f32 %v617, %v895
        %v925 = vsub.f32 %v622, %v900
        %v926 = vsub.f32 %v627, %v905
        %v927 = vsub.f32 %v632, %v910
        %v928 = vmul.f32 %v912, 1.442695
        %v929 = vpow.pop %v928
        %v930 = vmul.f32 %v913, 1.442695
        %v931 = vpow.pop %v930
        %v932 = vmul.f32 %v914, 1.442695
        %v933 = vpow.pop %v932
        %v934 = vmul.f32 %v915, 1.442695
        %v935 = vpow.pop %v934
        %v936 = vmul.f32 %v916, 1.442695
        %v937 = vpow.pop %v936
        %v938 = vmul.f32 %v917, 1.442695
        %v939 = vpow.pop %v938
        %v940 = vmul.f32 %v918, 1.442695
        %v941 = vpow.pop %v940
        %v942 = vmul.f32 %v919, 1.442695
        %v943 = vpow.pop %v942
        %v944 = vmul.f32 %v920, 1.442695
        %v945 = vpow.pop %v944
        %v946 = vmul.f32 %v921, 1.442695
        %v947 = vpow.pop %v946
        %v948 = vmul.f32 %v922, 1.442695
        %v949 = vpow.pop %v948
        %v950 = vmul.f32 %v923, 1.442695
        %v951 = vpow.pop %v950
        %v952 = vmul.f32 %v924, 1.442695
        %v953 = vpow.pop %v952
        %v954 = vmul.f32 %v925, 1.442695
        %v955 = vpow.pop %v954
        %v956 = vmul.f32 %v926, 1.442695
        %v957 = vpow.pop %v956
        %v958 = vmul.f32 %v927, 1.442695
        %v959 = vpow.pop %v958
        %v960 = vld [vmem:[#allocation3] sm:$0xff]
        %v961 = vld [vmem:[#allocation3 + $0x8] sm:$0xff]
        %v962 = vld [vmem:[#allocation3 + $0x10] sm:$0xff]
        %v963 = vld [vmem:[#allocation3 + $0x18] sm:$0xff]
        %v964 = vld [vmem:[#allocation3 + $0x20] sm:$0xff]
        %v965 = vld [vmem:[#allocation3 + $0x28] sm:$0xff]
        %v966 = vld [vmem:[#allocation3 + $0x30] sm:$0xff]
        %v967 = vld [vmem:[#allocation3 + $0x38] sm:$0xff]
        %v968 = vld [vmem:[#allocation3 + $0x40] sm:$0xff]
        %v969 = vld [vmem:[#allocation3 + $0x48] sm:$0xff]
        %v970 = vld [vmem:[#allocation3 + $0x50] sm:$0xff]
        %v971 = vld [vmem:[#allocation3 + $0x58] sm:$0xff]
        %v972 = vld [vmem:[#allocation3 + $0x60] sm:$0xff]
        %v973 = vld [vmem:[#allocation3 + $0x68] sm:$0xff]
        %v974 = vld [vmem:[#allocation3 + $0x70] sm:$0xff]
        %v975 = vld [vmem:[#allocation3 + $0x78] sm:$0xff]
        %v976 = vmul.f32 %v801, %v960
        %v977 = vmul.f32 %v803, %v961
        %v978 = vmul.f32 %v805, %v962
        %v979 = vmul.f32 %v807, %v963
        %v980 = vmul.f32 %v809, %v964
        %v981 = vmul.f32 %v811, %v965
        %v982 = vmul.f32 %v813, %v966
        %v983 = vmul.f32 %v815, %v967
        %v984 = vmul.f32 %v817, %v968
        %v985 = vmul.f32 %v819, %v969
        %v986 = vmul.f32 %v821, %v970
        %v987 = vmul.f32 %v823, %v971
        %v988 = vmul.f32 %v825, %v972
        %v989 = vmul.f32 %v827, %v973
        %v990 = vmul.f32 %v829, %v974
        %v991 = vmul.f32 %v831, %v975
        %v992 = vsel %vm704, 0.0, %v929
        %v993 = vsel %vm705, 0.0, %v931
        %v994 = vsel %vm706, 0.0, %v933
        %v995 = vsel %vm707, 0.0, %v935
        %v996 = vsel %vm708, 0.0, %v937
        %v997 = vsel %vm709, 0.0, %v939
        %v998 = vsel %vm710, 0.0, %v941
        %v999 = vsel %vm711, 0.0, %v943
        %v1000 = vsel %vm712, 0.0, %v945
        %v1001 = vsel %vm713, 0.0, %v947
        %v1002 = vsel %vm714, 0.0, %v949
        %v1003 = vsel %vm715, 0.0, %v951
        %v1004 = vsel %vm716, 0.0, %v953
        %v1005 = vsel %vm717, 0.0, %v955
        %v1006 = vsel %vm718, 0.0, %v957
        %v1007 = vsel %vm719, 0.0, %v959
        %1008 = vadd.xlane.f32.xlu0 %v992
        %v1009 = vpop.xlane.xlu0 %1008
        %1010 = vadd.xlane.f32.xlu0 %v993
        %v1011 = vpop.xlane.xlu0 %1010
        %1012 = vadd.xlane.f32.xlu0 %v994
        %v1013 = vpop.xlane.xlu0 %1012
        %1014 = vadd.xlane.f32.xlu0 %v995
        %v1015 = vpop.xlane.xlu0 %1014
        %1016 = vadd.xlane.f32.xlu0 %v996
        %v1017 = vpop.xlane.xlu0 %1016
        %1018 = vadd.xlane.f32.xlu0 %v997
        %v1019 = vpop.xlane.xlu0 %1018
        %1020 = vadd.xlane.f32.xlu0 %v998
        %v1021 = vpop.xlane.xlu0 %1020
        %1022 = vadd.xlane.f32.xlu0 %v999
        %v1023 = vpop.xlane.xlu0 %1022
        %1024 = vadd.xlane.f32.xlu0 %v1000
        %v1025 = vpop.xlane.xlu0 %1024
        %1026 = vadd.xlane.f32.xlu0 %v1001
        %v1027 = vpop.xlane.xlu0 %1026
        %1028 = vadd.xlane.f32.xlu0 %v1002
        %v1029 = vpop.xlane.xlu0 %1028
        %1030 = vadd.xlane.f32.xlu0 %v1003
        %v1031 = vpop.xlane.xlu0 %1030
        %1032 = vadd.xlane.f32.xlu0 %v1004
        %v1033 = vpop.xlane.xlu0 %1032
        %1034 = vadd.xlane.f32.xlu0 %v1005
        %v1035 = vpop.xlane.xlu0 %1034
        %1036 = vadd.xlane.f32.xlu0 %v1006
        %v1037 = vpop.xlane.xlu0 %1036
        %1038 = vadd.xlane.f32.xlu0 %v1007
        %v1039 = vpop.xlane.xlu0 %1038
        %v1040 = vadd.f32 %v976, %v1009
        %v1041 = vadd.f32 %v977, %v1011
        %v1042 = vadd.f32 %v978, %v1013
        %v1043 = vadd.f32 %v979, %v1015
        %v1044 = vadd.f32 %v980, %v1017
        %v1045 = vadd.f32 %v981, %v1019
        %v1046 = vadd.f32 %v982, %v1021
        %v1047 = vadd.f32 %v983, %v1023
        %v1048 = vadd.f32 %v984, %v1025
        %v1049 = vadd.f32 %v985, %v1027
        %v1050 = vadd.f32 %v986, %v1029
        %v1051 = vadd.f32 %v987, %v1031
        %v1052 = vadd.f32 %v988, %v1033
        %v1053 = vadd.f32 %v989, %v1035
        %v1054 = vadd.f32 %v990, %v1037
        %v1055 = vadd.f32 %v991, %v1039
        %vm1056 = vcmask 7168
        %1057 = vst.msk [vmem:[#allocation3] sm:$0xff] %vm1056, %v1040
        %1058 = vst.msk [vmem:[#allocation3 + $0x8] sm:$0xff] %vm1056, %v1041
        %1059 = vst.msk [vmem:[#allocation3 + $0x10] sm:$0xff] %vm1056, %v1042
        %1060 = vst.msk [vmem:[#allocation3 + $0x18] sm:$0xff] %vm1056, %v1043
        %1061 = vst.msk [vmem:[#allocation3 + $0x20] sm:$0xff] %vm1056, %v1044
        %1062 = vst.msk [vmem:[#allocation3 + $0x28] sm:$0xff] %vm1056, %v1045
        %1063 = vst.msk [vmem:[#allocation3 + $0x30] sm:$0xff] %vm1056, %v1046
        %1064 = vst.msk [vmem:[#allocation3 + $0x38] sm:$0xff] %vm1056, %v1047
        %1065 = vst.msk [vmem:[#allocation3 + $0x40] sm:$0xff] %vm1056, %v1048
        %1066 = vst.msk [vmem:[#allocation3 + $0x48] sm:$0xff] %vm1056, %v1049
        %1067 = vst.msk [vmem:[#allocation3 + $0x50] sm:$0xff] %vm1056, %v1050
        %1068 = vst.msk [vmem:[#allocation3 + $0x58] sm:$0xff] %vm1056, %v1051
        %1069 = vst.msk [vmem:[#allocation3 + $0x60] sm:$0xff] %vm1056, %v1052
        %1070 = vst.msk [vmem:[#allocation3 + $0x68] sm:$0xff] %vm1056, %v1053
        %1071 = vst.msk [vmem:[#allocation3 + $0x70] sm:$0xff] %vm1056, %v1054
        %1072 = vst.msk [vmem:[#allocation3 + $0x78] sm:$0xff] %vm1056, %v1055
        %v1073 = vld [vmem:[#allocation4] sm:$0xff]
        %v1074 = vld [vmem:[#allocation4 + $0x8] sm:$0xff]
        %v1075 = vld [vmem:[#allocation4 + $0x10] sm:$0xff]
        %v1076 = vld [vmem:[#allocation4 + $0x18] sm:$0xff]
        %v1077 = vld [vmem:[#allocation4 + $0x20] sm:$0xff]
        %v1078 = vld [vmem:[#allocation4 + $0x28] sm:$0xff]
        %v1079 = vld [vmem:[#allocation4 + $0x30] sm:$0xff]
        %v1080 = vld [vmem:[#allocation4 + $0x38] sm:$0xff]
        %v1081 = vld [vmem:[#allocation4 + $0x40] sm:$0xff]
        %v1082 = vld [vmem:[#allocation4 + $0x48] sm:$0xff]
        %v1083 = vld [vmem:[#allocation4 + $0x50] sm:$0xff]
        %v1084 = vld [vmem:[#allocation4 + $0x58] sm:$0xff]
        %v1085 = vld [vmem:[#allocation4 + $0x60] sm:$0xff]
        %v1086 = vld [vmem:[#allocation4 + $0x68] sm:$0xff]
        %v1087 = vld [vmem:[#allocation4 + $0x70] sm:$0xff]
        %v1088 = vld [vmem:[#allocation4 + $0x78] sm:$0xff]
        %v1089 = vsel %vm704, %v557, 0.0
        %v1090 = vsel %vm705, %v562, 0.0
        %v1091 = vsel %vm706, %v567, 0.0
        %v1092 = vsel %vm707, %v572, 0.0
        %v1093 = vsel %vm708, %v577, 0.0
        %v1094 = vsel %vm709, %v582, 0.0
        %v1095 = vsel %vm710, %v587, 0.0
        %v1096 = vsel %vm711, %v592, 0.0
        %v1097 = vsel %vm712, %v597, 0.0
        %v1098 = vsel %vm713, %v602, 0.0
        %v1099 = vsel %vm714, %v607, 0.0
        %v1100 = vsel %vm715, %v612, 0.0
        %v1101 = vsel %vm716, %v617, 0.0
        %v1102 = vsel %vm717, %v622, 0.0
        %v1103 = vsel %vm718, %v627, 0.0
        %v1104 = vsel %vm719, %v632, 0.0
        %1105 = vadd.xlane.f32.xlu0 %v1089
        %v1106 = vpop.xlane.xlu0 %1105
        %1107 = vadd.xlane.f32.xlu0 %v1090
        %v1108 = vpop.xlane.xlu0 %1107
        %1109 = vadd.xlane.f32.xlu0 %v1091
        %v1110 = vpop.xlane.xlu0 %1109
        %1111 = vadd.xlane.f32.xlu0 %v1092
        %v1112 = vpop.xlane.xlu0 %1111
        %1113 = vadd.xlane.f32.xlu0 %v1093
        %v1114 = vpop.xlane.xlu0 %1113
        %1115 = vadd.xlane.f32.xlu0 %v1094
        %v1116 = vpop.xlane.xlu0 %1115
        %1117 = vadd.xlane.f32.xlu0 %v1095
        %v1118 = vpop.xlane.xlu0 %1117
        %1119 = vadd.xlane.f32.xlu0 %v1096
        %v1120 = vpop.xlane.xlu0 %1119
        %1121 = vadd.xlane.f32.xlu0 %v1097
        %v1122 = vpop.xlane.xlu0 %1121
        %1123 = vadd.xlane.f32.xlu0 %v1098
        %v1124 = vpop.xlane.xlu0 %1123
        %1125 = vadd.xlane.f32.xlu0 %v1099
        %v1126 = vpop.xlane.xlu0 %1125
        %1127 = vadd.xlane.f32.xlu0 %v1100
        %v1128 = vpop.xlane.xlu0 %1127
        %1129 = vadd.xlane.f32.xlu0 %v1101
        %v1130 = vpop.xlane.xlu0 %1129
        %1131 = vadd.xlane.f32.xlu0 %v1102
        %v1132 = vpop.xlane.xlu0 %1131
        %1133 = vadd.xlane.f32.xlu0 %v1103
        %v1134 = vpop.xlane.xlu0 %1133
        %1135 = vadd.xlane.f32.xlu0 %v1104
        %v1136 = vpop.xlane.xlu0 %1135
        %v1137 = vadd.f32 %v1073, %v1106
        %v1138 = vadd.f32 %v1074, %v1108
        %v1139 = vadd.f32 %v1075, %v1110
        %v1140 = vadd.f32 %v1076, %v1112
        %v1141 = vadd.f32 %v1077, %v1114
        %v1142 = vadd.f32 %v1078, %v1116
        %v1143 = vadd.f32 %v1079, %v1118
        %v1144 = vadd.f32 %v1080, %v1120
        %v1145 = vadd.f32 %v1081, %v1122
        %v1146 = vadd.f32 %v1082, %v1124
        %v1147 = vadd.f32 %v1083, %v1126
        %v1148 = vadd.f32 %v1084, %v1128
        %v1149 = vadd.f32 %v1085, %v1130
        %v1150 = vadd.f32 %v1086, %v1132
        %v1151 = vadd.f32 %v1087, %v1134
        %v1152 = vadd.f32 %v1088, %v1136
        %1153 = vst.msk [vmem:[#allocation4] sm:$0xff] %vm1056, %v1137
        %1154 = vst.msk [vmem:[#allocation4 + $0x8] sm:$0xff] %vm1056, %v1138
        %1155 = vst.msk [vmem:[#allocation4 + $0x10] sm:$0xff] %vm1056, %v1139
        %1156 = vst.msk [vmem:[#allocation4 + $0x18] sm:$0xff] %vm1056, %v1140
        %1157 = vst.msk [vmem:[#allocation4 + $0x20] sm:$0xff] %vm1056, %v1141
        %1158 = vst.msk [vmem:[#allocation4 + $0x28] sm:$0xff] %vm1056, %v1142
        %1159 = vst.msk [vmem:[#allocation4 + $0x30] sm:$0xff] %vm1056, %v1143
        %1160 = vst.msk [vmem:[#allocation4 + $0x38] sm:$0xff] %vm1056, %v1144
        %1161 = vst.msk [vmem:[#allocation4 + $0x40] sm:$0xff] %vm1056, %v1145
        %1162 = vst.msk [vmem:[#allocation4 + $0x48] sm:$0xff] %vm1056, %v1146
        %1163 = vst.msk [vmem:[#allocation4 + $0x50] sm:$0xff] %vm1056, %v1147
        %1164 = vst.msk [vmem:[#allocation4 + $0x58] sm:$0xff] %vm1056, %v1148
        %1165 = vst.msk [vmem:[#allocation4 + $0x60] sm:$0xff] %vm1056, %v1149
        %1166 = vst.msk [vmem:[#allocation4 + $0x68] sm:$0xff] %vm1056, %v1150
        %1167 = vst.msk [vmem:[#allocation4 + $0x70] sm:$0xff] %vm1056, %v1151
        %1168 = vst.msk [vmem:[#allocation4 + $0x78] sm:$0xff] %vm1056, %v1152
        %v1169 = vld [vmem:[#allocation5] sm:$0xff]
        %v1170 = vld [vmem:[#allocation5 + $0x8] sm:$0xff]
        %v1171 = vld [vmem:[#allocation5 + $0x10] sm:$0xff]
        %v1172 = vld [vmem:[#allocation5 + $0x18] sm:$0xff]
        %v1173 = vld [vmem:[#allocation5 + $0x20] sm:$0xff]
        %v1174 = vld [vmem:[#allocation5 + $0x28] sm:$0xff]
        %v1175 = vld [vmem:[#allocation5 + $0x30] sm:$0xff]
        %v1176 = vld [vmem:[#allocation5 + $0x38] sm:$0xff]
        %v1177 = vld [vmem:[#allocation5 + $0x40] sm:$0xff]
        %v1178 = vld [vmem:[#allocation5 + $0x48] sm:$0xff]
        %v1179 = vld [vmem:[#allocation5 + $0x50] sm:$0xff]
        %v1180 = vld [vmem:[#allocation5 + $0x58] sm:$0xff]
        %v1181 = vld [vmem:[#allocation5 + $0x60] sm:$0xff]
        %v1182 = vld [vmem:[#allocation5 + $0x68] sm:$0xff]
        %v1183 = vld [vmem:[#allocation5 + $0x70] sm:$0xff]
        %v1184 = vld [vmem:[#allocation5 + $0x78] sm:$0xff]
        %v1185 = vsel %vm704, 1, 0
        %v1186 = vsel %vm705, 1, 0
        %v1187 = vsel %vm706, 1, 0
        %v1188 = vsel %vm707, 1, 0
        %v1189 = vsel %vm708, 1, 0
        %v1190 = vsel %vm709, 1, 0
        %v1191 = vsel %vm710, 1, 0
        %v1192 = vsel %vm711, 1, 0
        %v1193 = vsel %vm712, 1, 0
        %v1194 = vsel %vm713, 1, 0
        %v1195 = vsel %vm714, 1, 0
        %v1196 = vsel %vm715, 1, 0
        %v1197 = vsel %vm716, 1, 0
        %v1198 = vsel %vm717, 1, 0
        %v1199 = vsel %vm718, 1, 0
        %v1200 = vsel %vm719, 1, 0
        %v1201 = vcvt.s32.f32 %v1185
        %v1202 = vcvt.s32.f32 %v1186
        %v1203 = vcvt.s32.f32 %v1187
        %v1204 = vcvt.s32.f32 %v1188
        %v1205 = vcvt.s32.f32 %v1189
        %v1206 = vcvt.s32.f32 %v1190
        %v1207 = vcvt.s32.f32 %v1191
        %v1208 = vcvt.s32.f32 %v1192
        %v1209 = vcvt.s32.f32 %v1193
        %v1210 = vcvt.s32.f32 %v1194
        %v1211 = vcvt.s32.f32 %v1195
        %v1212 = vcvt.s32.f32 %v1196
        %v1213 = vcvt.s32.f32 %v1197
        %v1214 = vcvt.s32.f32 %v1198
        %v1215 = vcvt.s32.f32 %v1199
        %v1216 = vcvt.s32.f32 %v1200
        %1217 = vadd.xlane.f32.xlu0 %v1201
        %v1218 = vpop.xlane.xlu0 %1217
        %1219 = vadd.xlane.f32.xlu0 %v1202
        %v1220 = vpop.xlane.xlu0 %1219
        %1221 = vadd.xlane.f32.xlu0 %v1203
        %v1222 = vpop.xlane.xlu0 %1221
        %1223 = vadd.xlane.f32.xlu0 %v1204
        %v1224 = vpop.xlane.xlu0 %1223
        %1225 = vadd.xlane.f32.xlu0 %v1205
        %v1226 = vpop.xlane.xlu0 %1225
        %1227 = vadd.xlane.f32.xlu0 %v1206
        %v1228 = vpop.xlane.xlu0 %1227
        %1229 = vadd.xlane.f32.xlu0 %v1207
        %v1230 = vpop.xlane.xlu0 %1229
        %1231 = vadd.xlane.f32.xlu0 %v1208
        %v1232 = vpop.xlane.xlu0 %1231
        %1233 = vadd.xlane.f32.xlu0 %v1209
        %v1234 = vpop.xlane.xlu0 %1233
        %1235 = vadd.xlane.f32.xlu0 %v1210
        %v1236 = vpop.xlane.xlu0 %1235
        %1237 = vadd.xlane.f32.xlu0 %v1211
        %v1238 = vpop.xlane.xlu0 %1237
        %1239 = vadd.xlane.f32.xlu0 %v1212
        %v1240 = vpop.xlane.xlu0 %1239
        %1241 = vadd.xlane.f32.xlu0 %v1213
        %v1242 = vpop.xlane.xlu0 %1241
        %1243 = vadd.xlane.f32.xlu0 %v1214
        %v1244 = vpop.xlane.xlu0 %1243
        %1245 = vadd.xlane.f32.xlu0 %v1215
        %v1246 = vpop.xlane.xlu0 %1245
        %1247 = vadd.xlane.f32.xlu0 %v1216
        %v1248 = vpop.xlane.xlu0 %1247
        %v1249 = vadd.f32 %v1169, %v1218
        %v1250 = vadd.f32 %v1170, %v1220
        %v1251 = vadd.f32 %v1171, %v1222
        %v1252 = vadd.f32 %v1172, %v1224
        %v1253 = vadd.f32 %v1173, %v1226
        %v1254 = vadd.f32 %v1174, %v1228
        %v1255 = vadd.f32 %v1175, %v1230
        %v1256 = vadd.f32 %v1176, %v1232
        %v1257 = vadd.f32 %v1177, %v1234
        %v1258 = vadd.f32 %v1178, %v1236
        %v1259 = vadd.f32 %v1179, %v1238
        %v1260 = vadd.f32 %v1180, %v1240
        %v1261 = vadd.f32 %v1181, %v1242
        %v1262 = vadd.f32 %v1182, %v1244
        %v1263 = vadd.f32 %v1183, %v1246
        %v1264 = vadd.f32 %v1184, %v1248
        %1265 = vst.msk [vmem:[#allocation5] sm:$0xff] %vm1056, %v1249
        %1266 = vst.msk [vmem:[#allocation5 + $0x8] sm:$0xff] %vm1056, %v1250
        %1267 = vst.msk [vmem:[#allocation5 + $0x10] sm:$0xff] %vm1056, %v1251
        %1268 = vst.msk [vmem:[#allocation5 + $0x18] sm:$0xff] %vm1056, %v1252
        %1269 = vst.msk [vmem:[#allocation5 + $0x20] sm:$0xff] %vm1056, %v1253
        %1270 = vst.msk [vmem:[#allocation5 + $0x28] sm:$0xff] %vm1056, %v1254
        %1271 = vst.msk [vmem:[#allocation5 + $0x30] sm:$0xff] %vm1056, %v1255
        %1272 = vst.msk [vmem:[#allocation5 + $0x38] sm:$0xff] %vm1056, %v1256
        %1273 = vst.msk [vmem:[#allocation5 + $0x40] sm:$0xff] %vm1056, %v1257
        %1274 = vst.msk [vmem:[#allocation5 + $0x48] sm:$0xff] %vm1056, %v1258
        %1275 = vst.msk [vmem:[#allocation5 + $0x50] sm:$0xff] %vm1056, %v1259
        %1276 = vst.msk [vmem:[#allocation5 + $0x58] sm:$0xff] %vm1056, %v1260
        %1277 = vst.msk [vmem:[#allocation5 + $0x60] sm:$0xff] %vm1056, %v1261
        %1278 = vst.msk [vmem:[#allocation5 + $0x68] sm:$0xff] %vm1056, %v1262
        %1279 = vst.msk [vmem:[#allocation5 + $0x70] sm:$0xff] %vm1056, %v1263
        %1280 = vst.msk [vmem:[#allocation5 + $0x78] sm:$0xff] %vm1056, %v1264
        %1281 = vst.msk [vmem:[#allocation2] sm:$0xff] %vm1056, %v768
        %1282 = vst.msk [vmem:[#allocation2 + $0x8] sm:$0xff] %vm1056, %v769
        %1283 = vst.msk [vmem:[#allocation2 + $0x10] sm:$0xff] %vm1056, %v770
        %1284 = vst.msk [vmem:[#allocation2 + $0x18] sm:$0xff] %vm1056, %v771
        %1285 = vst.msk [vmem:[#allocation2 + $0x20] sm:$0xff] %vm1056, %v772
        %1286 = vst.msk [vmem:[#allocation2 + $0x28] sm:$0xff] %vm1056, %v773
        %1287 = vst.msk [vmem:[#allocation2 + $0x30] sm:$0xff] %vm1056, %v774
        %1288 = vst.msk [vmem:[#allocation2 + $0x38] sm:$0xff] %vm1056, %v775
        %1289 = vst.msk [vmem:[#allocation2 + $0x40] sm:$0xff] %vm1056, %v776
        %1290 = vst.msk [vmem:[#allocation2 + $0x48] sm:$0xff] %vm1056, %v777
        %1291 = vst.msk [vmem:[#allocation2 + $0x50] sm:$0xff] %vm1056, %v778
        %1292 = vst.msk [vmem:[#allocation2 + $0x58] sm:$0xff] %vm1056, %v779
        %1293 = vst.msk [vmem:[#allocation2 + $0x60] sm:$0xff] %vm1056, %v780
        %1294 = vst.msk [vmem:[#allocation2 + $0x68] sm:$0xff] %vm1056, %v781
        %1295 = vst.msk [vmem:[#allocation2 + $0x70] sm:$0xff] %vm1056, %v782
        %1296 = vst.msk [vmem:[#allocation2 + $0x78] sm:$0xff] %vm1056, %v783
        %p1297 = scmp.eq.s32.totalorder %s20, 4
        // Predicated region
        $region79: #{tpu_custom_call.1} parent=69 // pred_check
          %p1298 = pneg %p1297
        $region80: #{tpu_custom_call.1} parent=69 // pred_check_branch
          %1300 = sbr.rel (%p1298) target = $region82
        $region81: #{tpu_custom_call.1} parent=69 // pred_region
          %v1301 = vld [vmem:[#allocation5] sm:$0xff]
          %v1302 = vld [vmem:[#allocation5 + $0x8] sm:$0xff]
          %v1303 = vld [vmem:[#allocation5 + $0x10] sm:$0xff]
          %v1304 = vld [vmem:[#allocation5 + $0x18] sm:$0xff]
          %v1305 = vld [vmem:[#allocation5 + $0x20] sm:$0xff]
          %v1306 = vld [vmem:[#allocation5 + $0x28] sm:$0xff]
          %v1307 = vld [vmem:[#allocation5 + $0x30] sm:$0xff]
          %v1308 = vld [vmem:[#allocation5 + $0x38] sm:$0xff]
          %v1309 = vld [vmem:[#allocation5 + $0x40] sm:$0xff]
          %v1310 = vld [vmem:[#allocation5 + $0x48] sm:$0xff]
          %v1311 = vld [vmem:[#allocation5 + $0x50] sm:$0xff]
          %v1312 = vld [vmem:[#allocation5 + $0x58] sm:$0xff]
          %v1313 = vld [vmem:[#allocation5 + $0x60] sm:$0xff]
          %v1314 = vld [vmem:[#allocation5 + $0x68] sm:$0xff]
          %v1315 = vld [vmem:[#allocation5 + $0x70] sm:$0xff]
          %v1316 = vld [vmem:[#allocation5 + $0x78] sm:$0xff]
          %v1317 = vld [vmem:[#allocation3] sm:$0xff]
          %v1318 = vld [vmem:[#allocation3 + $0x8] sm:$0xff]
          %v1319 = vld [vmem:[#allocation3 + $0x10] sm:$0xff]
          %v1320 = vld [vmem:[#allocation3 + $0x18] sm:$0xff]
          %v1321 = vld [vmem:[#allocation3 + $0x20] sm:$0xff]
          %v1322 = vld [vmem:[#allocation3 + $0x28] sm:$0xff]
          %v1323 = vld [vmem:[#allocation3 + $0x30] sm:$0xff]
          %v1324 = vld [vmem:[#allocation3 + $0x38] sm:$0xff]
          %v1325 = vld [vmem:[#allocation3 + $0x40] sm:$0xff]
          %v1326 = vld [vmem:[#allocation3 + $0x48] sm:$0xff]
          %v1327 = vld [vmem:[#allocation3 + $0x50] sm:$0xff]
          %v1328 = vld [vmem:[#allocation3 + $0x58] sm:$0xff]
          %v1329 = vld [vmem:[#allocation3 + $0x60] sm:$0xff]
          %v1330 = vld [vmem:[#allocation3 + $0x68] sm:$0xff]
          %v1331 = vld [vmem:[#allocation3 + $0x70] sm:$0xff]
          %v1332 = vld [vmem:[#allocation3 + $0x78] sm:$0xff]
          %v1333 = vsub.f32 640.0, %v1301
          %v1334 = vsub.f32 640.0, %v1302
          %v1335 = vsub.f32 640.0, %v1303
          %v1336 = vsub.f32 640.0, %v1304
          %v1337 = vsub.f32 640.0, %v1305
          %v1338 = vsub.f32 640.0, %v1306
          %v1339 = vsub.f32 640.0, %v1307
          %v1340 = vsub.f32 640.0, %v1308
          %v1341 = vsub.f32 640.0, %v1309
          %v1342 = vsub.f32 640.0, %v1310
          %v1343 = vsub.f32 640.0, %v1311
          %v1344 = vsub.f32 640.0, %v1312
          %v1345 = vsub.f32 640.0, %v1313
          %v1346 = vsub.f32 640.0, %v1314
          %v1347 = vsub.f32 640.0, %v1315
          %v1348 = vsub.f32 640.0, %v1316
          %v1349 = vmul.f32 %v1333, 1e-05
          %v1350 = vmul.f32 %v1334, 1e-05
          %v1351 = vmul.f32 %v1335, 1e-05
          %v1352 = vmul.f32 %v1336, 1e-05
          %v1353 = vmul.f32 %v1337, 1e-05
          %v1354 = vmul.f32 %v1338, 1e-05
          %v1355 = vmul.f32 %v1339, 1e-05
          %v1356 = vmul.f32 %v1340, 1e-05
          %v1357 = vmul.f32 %v1341, 1e-05
          %v1358 = vmul.f32 %v1342, 1e-05
          %v1359 = vmul.f32 %v1343, 1e-05
          %v1360 = vmul.f32 %v1344, 1e-05
          %v1361 = vmul.f32 %v1345, 1e-05
          %v1362 = vmul.f32 %v1346, 1e-05
          %v1363 = vmul.f32 %v1347, 1e-05
          %v1364 = vmul.f32 %v1348, 1e-05
          %v1365 = vadd.f32 %v1317, %v1349
          %v1366 = vadd.f32 %v1318, %v1350
          %v1367 = vadd.f32 %v1319, %v1351
          %v1368 = vadd.f32 %v1320, %v1352
          %v1369 = vadd.f32 %v1321, %v1353
          %v1370 = vadd.f32 %v1322, %v1354
          %v1371 = vadd.f32 %v1323, %v1355
          %v1372 = vadd.f32 %v1324, %v1356
          %v1373 = vadd.f32 %v1325, %v1357
          %v1374 = vadd.f32 %v1326, %v1358
          %v1375 = vadd.f32 %v1327, %v1359
          %v1376 = vadd.f32 %v1328, %v1360
          %v1377 = vadd.f32 %v1329, %v1361
          %v1378 = vadd.f32 %v1330, %v1362
          %v1379 = vadd.f32 %v1331, %v1363
          %v1380 = vadd.f32 %v1332, %v1364
          %v1381 = vld [vmem:[#allocation4] sm:$0xff]
          %v1382 = vld [vmem:[#allocation4 + $0x8] sm:$0xff]
          %v1383 = vld [vmem:[#allocation4 + $0x10] sm:$0xff]
          %v1384 = vld [vmem:[#allocation4 + $0x18] sm:$0xff]
          %v1385 = vld [vmem:[#allocation4 + $0x20] sm:$0xff]
          %v1386 = vld [vmem:[#allocation4 + $0x28] sm:$0xff]
          %v1387 = vld [vmem:[#allocation4 + $0x30] sm:$0xff]
          %v1388 = vld [vmem:[#allocation4 + $0x38] sm:$0xff]
          %v1389 = vld [vmem:[#allocation4 + $0x40] sm:$0xff]
          %v1390 = vld [vmem:[#allocation4 + $0x48] sm:$0xff]
          %v1391 = vld [vmem:[#allocation4 + $0x50] sm:$0xff]
          %v1392 = vld [vmem:[#allocation4 + $0x58] sm:$0xff]
          %v1393 = vld [vmem:[#allocation4 + $0x60] sm:$0xff]
          %v1394 = vld [vmem:[#allocation4 + $0x68] sm:$0xff]
          %v1395 = vld [vmem:[#allocation4 + $0x70] sm:$0xff]
          %v1396 = vld [vmem:[#allocation4 + $0x78] sm:$0xff]
          %v1397 = vrcp.pop %v1301
          %v1398 = vmul.f32 %v1381, %v1397
          %v1399 = vrcp.pop %v1302
          %v1400 = vmul.f32 %v1382, %v1399
          %v1401 = vrcp.pop %v1303
          %v1402 = vmul.f32 %v1383, %v1401
          %v1403 = vrcp.pop %v1304
          %v1404 = vmul.f32 %v1384, %v1403
          %v1405 = vrcp.pop %v1305
          %v1406 = vmul.f32 %v1385, %v1405
          %v1407 = vrcp.pop %v1306
          %v1408 = vmul.f32 %v1386, %v1407
          %v1409 = vrcp.pop %v1307
          %v1410 = vmul.f32 %v1387, %v1409
          %v1411 = vrcp.pop %v1308
          %v1412 = vmul.f32 %v1388, %v1411
          %v1413 = vrcp.pop %v1309
          %v1414 = vmul.f32 %v1389, %v1413
          %v1415 = vrcp.pop %v1310
          %v1416 = vmul.f32 %v1390, %v1415
          %v1417 = vrcp.pop %v1311
          %v1418 = vmul.f32 %v1391, %v1417
          %v1419 = vrcp.pop %v1312
          %v1420 = vmul.f32 %v1392, %v1419
          %v1421 = vrcp.pop %v1313
          %v1422 = vmul.f32 %v1393, %v1421
          %v1423 = vrcp.pop %v1314
          %v1424 = vmul.f32 %v1394, %v1423
          %v1425 = vrcp.pop %v1315
          %v1426 = vmul.f32 %v1395, %v1425
          %v1427 = vrcp.pop %v1316
          %v1428 = vmul.f32 %v1396, %v1427
          %v1429 = vld [vmem:[#allocation2] sm:$0xff]
          %v1430 = vld [vmem:[#allocation2 + $0x8] sm:$0xff]
          %v1431 = vld [vmem:[#allocation2 + $0x10] sm:$0xff]
          %v1432 = vld [vmem:[#allocation2 + $0x18] sm:$0xff]
          %v1433 = vld [vmem:[#allocation2 + $0x20] sm:$0xff]
          %v1434 = vld [vmem:[#allocation2 + $0x28] sm:$0xff]
          %v1435 = vld [vmem:[#allocation2 + $0x30] sm:$0xff]
          %v1436 = vld [vmem:[#allocation2 + $0x38] sm:$0xff]
          %v1437 = vld [vmem:[#allocation2 + $0x40] sm:$0xff]
          %v1438 = vld [vmem:[#allocation2 + $0x48] sm:$0xff]
          %v1439 = vld [vmem:[#allocation2 + $0x50] sm:$0xff]
          %v1440 = vld [vmem:[#allocation2 + $0x58] sm:$0xff]
          %v1441 = vld [vmem:[#allocation2 + $0x60] sm:$0xff]
          %v1442 = vld [vmem:[#allocation2 + $0x68] sm:$0xff]
          %v1443 = vld [vmem:[#allocation2 + $0x70] sm:$0xff]
          %v1444 = vld [vmem:[#allocation2 + $0x78] sm:$0xff]
          %v1445 = vsub.f32 %v1398, %v1429
          %v1446 = vsub.f32 %v1400, %v1430
          %v1447 = vsub.f32 %v1402, %v1431
          %v1448 = vsub.f32 %v1404, %v1432
          %v1449 = vsub.f32 %v1406, %v1433
          %v1450 = vsub.f32 %v1408, %v1434
          %v1451 = vsub.f32 %v1410, %v1435
          %v1452 = vsub.f32 %v1412, %v1436
          %v1453 = vsub.f32 %v1414, %v1437
          %v1454 = vsub.f32 %v1416, %v1438
          %v1455 = vsub.f32 %v1418, %v1439
          %v1456 = vsub.f32 %v1420, %v1440
          %v1457 = vsub.f32 %v1422, %v1441
          %v1458 = vsub.f32 %v1424, %v1442
          %v1459 = vsub.f32 %v1426, %v1443
          %v1460 = vsub.f32 %v1428, %v1444
          %v1461 = vlog2.pop %v1365
          %v1462 = vmul.f32 %v1461, 0.6931472
          %v1463 = vlog2.pop %v1366
          %v1464 = vmul.f32 %v1463, 0.6931472
          %v1465 = vlog2.pop %v1367
          %v1466 = vmul.f32 %v1465, 0.6931472
          %v1467 = vlog2.pop %v1368
          %v1468 = vmul.f32 %v1467, 0.6931472
          %v1469 = vlog2.pop %v1369
          %v1470 = vmul.f32 %v1469, 0.6931472
          %v1471 = vlog2.pop %v1370
          %v1472 = vmul.f32 %v1471, 0.6931472
          %v1473 = vlog2.pop %v1371
          %v1474 = vmul.f32 %v1473, 0.6931472
          %v1475 = vlog2.pop %v1372
          %v1476 = vmul.f32 %v1475, 0.6931472
          %v1477 = vlog2.pop %v1373
          %v1478 = vmul.f32 %v1477, 0.6931472
          %v1479 = vlog2.pop %v1374
          %v1480 = vmul.f32 %v1479, 0.6931472
          %v1481 = vlog2.pop %v1375
          %v1482 = vmul.f32 %v1481, 0.6931472
          %v1483 = vlog2.pop %v1376
          %v1484 = vmul.f32 %v1483, 0.6931472
          %v1485 = vlog2.pop %v1377
          %v1486 = vmul.f32 %v1485, 0.6931472
          %v1487 = vlog2.pop %v1378
          %v1488 = vmul.f32 %v1487, 0.6931472
          %v1489 = vlog2.pop %v1379
          %v1490 = vmul.f32 %v1489, 0.6931472
          %v1491 = vlog2.pop %v1380
          %v1492 = vmul.f32 %v1491, 0.6931472
          %v1493 = vsub.f32 %v1445, %v1462
          %v1494 = vsub.f32 %v1446, %v1464
          %v1495 = vsub.f32 %v1447, %v1466
          %v1496 = vsub.f32 %v1448, %v1468
          %v1497 = vsub.f32 %v1449, %v1470
          %v1498 = vsub.f32 %v1450, %v1472
          %v1499 = vsub.f32 %v1451, %v1474
          %v1500 = vsub.f32 %v1452, %v1476
          %v1501 = vsub.f32 %v1453, %v1478
          %v1502 = vsub.f32 %v1454, %v1480
          %v1503 = vsub.f32 %v1455, %v1482
          %v1504 = vsub.f32 %v1456, %v1484
          %v1505 = vsub.f32 %v1457, %v1486
          %v1506 = vsub.f32 %v1458, %v1488
          %v1507 = vsub.f32 %v1459, %v1490
          %v1508 = vsub.f32 %v1460, %v1492
          %1509 = vst.msk [vmem:[%s330] sm:$0xff] %vm1056, %v1493
          %1510 = vst.msk [vmem:[%s330 + $0x8] sm:$0xff] %vm1056, %v1494
          %1511 = vst.msk [vmem:[%s330 + $0x10] sm:$0xff] %vm1056, %v1495
          %1512 = vst.msk [vmem:[%s330 + $0x18] sm:$0xff] %vm1056, %v1496
          %1513 = vst.msk [vmem:[%s330 + $0x20] sm:$0xff] %vm1056, %v1497
          %1514 = vst.msk [vmem:[%s330 + $0x28] sm:$0xff] %vm1056, %v1498
          %1515 = vst.msk [vmem:[%s330 + $0x30] sm:$0xff] %vm1056, %v1499
          %1516 = vst.msk [vmem:[%s330 + $0x38] sm:$0xff] %vm1056, %v1500
          %1517 = vst.msk [vmem:[%s330 + $0x40] sm:$0xff] %vm1056, %v1501
          %1518 = vst.msk [vmem:[%s330 + $0x48] sm:$0xff] %vm1056, %v1502
          %1519 = vst.msk [vmem:[%s330 + $0x50] sm:$0xff] %vm1056, %v1503
          %1520 = vst.msk [vmem:[%s330 + $0x58] sm:$0xff] %vm1056, %v1504
          %1521 = vst.msk [vmem:[%s330 + $0x60] sm:$0xff] %vm1056, %v1505
          %1522 = vst.msk [vmem:[%s330 + $0x68] sm:$0xff] %vm1056, %v1506
          %1523 = vst.msk [vmem:[%s330 + $0x70] sm:$0xff] %vm1056, %v1507
          %1524 = vst.msk [vmem:[%s330 + $0x78] sm:$0xff] %vm1056, %v1508
        $region82: #{tpu_custom_call.1} parent=69 // pred_fallthru
          _
        %s1525 = smul.u32 16, %s19
        %p1526 = scmp.lt.s32.totalorder %s1525, 47
        %s1527 = scalar_select %p1526, %s1525, 47
        %s1528 = smul.addr %s1527, 8
        %s1529 = scalar_lea.vmem %s4, %s1528
        // Predicated region
        $region83: #{tpu_custom_call.1} parent=69 // pred_check
          %p1530 = pneg %p149
        $region84: #{tpu_custom_call.1} parent=69 // pred_check_branch
          %1532 = sbr.rel (%p1530) target = $region86
        $region85: #{tpu_custom_call.1} parent=69 // pred_region
          %s1533 = smul.u32 16, %s19
        $region86: #{tpu_custom_call.1} parent=69 // pred_fallthru
          _
      $region70: #{tpu_custom_call.1} parent=5 // pred_fallthru
        _
      %p1534 = scmp.le.s32.totalorder 2, %s10
      // Predicated region
      $region87: #{tpu_custom_call.1} parent=5 // pred_check
        %p1535 = pneg %p1534
      $region88: #{tpu_custom_call.1} parent=5 // pred_check_branch
        %1537 = sbr.rel (%p1535) target = $region90
      $region89: #{tpu_custom_call.1} parent=5 // pred_region
        %s1538 = ssub.s32 %s10, 2
        // Predicated region
        $region91: #{tpu_custom_call.1} parent=89 // pred_check
          %p1539 = pneg %p155
        $region92: #{tpu_custom_call.1} parent=89 // pred_check_branch
          %1541 = sbr.rel (%p1539) target = $region94
        $region93: #{tpu_custom_call.1} parent=89 // pred_region
          %s1542 = smul.u32 16, %s21
          %p1543 = scmp.lt.s32.totalorder %s1542, 47
          %s1544 = scalar_select %p1543, %s1542, 47
          %s1545 = smul.addr %s1544, 8
          %s1546 = scalar_lea.vmem %s4, %s1545
        $region94: #{tpu_custom_call.1} parent=89 // pred_fallthru
          _
      $region90: #{tpu_custom_call.1} parent=5 // pred_fallthru
        _
    $region6: #{tpu_custom_call.1} parent=1 // loop_footer
      %s14 = sadd.s32 1, %s10
    $region7: #{tpu_custom_call.1} parent=1 // loop_footer_branch
      %9 = sbr.rel target = $region3
    $region8: #{tpu_custom_call.1} parent=1 // loop_exit
      _

</llo_original>
